<compile_context>
chip_gen: v5e
topology: v5e:2x2
jax: 0.10.0
libtpu: 0.0.40
codegen_flags: <defaults>
</compile_context>

<pallas_src>
import functools

import jax
import jax.numpy as jnp
from jax.experimental import pallas as pl
from jax.experimental.pallas import tpu as pltpu


def _contrastive_kernel(fi_ref, fii_ref, fjj_ref, fiid_ref, fjjd_ref,
                        qlab_ref, iilab_ref, jjlab_ref, out_ref,
                        den_acc, cntii_acc, cntjj_acc,
                        *, inv_tau, eps, pad_cols):
    n = pl.program_id(1)
    n_last = pl.num_programs(1) - 1

    @pl.when(n == 0)
    def _init():
        den_acc[...] = jnp.zeros_like(den_acc)
        cntii_acc[...] = jnp.zeros_like(cntii_acc)
        cntjj_acc[...] = jnp.zeros_like(cntjj_acc)

    # Hoist /tau out of the (TN, TP) domain: scale the small (d, TP) query
    # slab once per step instead of dividing the matmul outputs.
    fi = (fi_ref[...].astype(jnp.float32) * inv_tau).astype(jnp.bfloat16)

    # (d, TN)^T . (d, TP) -> (TN, TP) on the MXU (bf16 in, f32 accumulate).
    dims = (((0,), (0,)), ((), ()))
    e1 = jnp.exp(jax.lax.dot_general(fii_ref[...], fi, dims,
                                     preferred_element_type=jnp.float32))
    e2 = jnp.exp(jax.lax.dot_general(fjj_ref[...], fi, dims,
                                     preferred_element_type=jnp.float32))

    qlab = qlab_ref[...]                    # (1, TP)  query labels (lanes)
    ii_eq = iilab_ref[...] == qlab          # (TN, TP) bool
    jj_eq = jjlab_ref[...] == qlab          # (TN, TP) bool

    den_acc[...] += jnp.sum(e1 + jnp.where(jj_eq, e2, 0.0),
                            axis=0, keepdims=True)
    cntii_acc[...] += jnp.sum(jnp.where(ii_eq, 1.0, 0.0),
                              axis=0, keepdims=True)
    cntjj_acc[...] += jnp.sum(jnp.where(jj_eq, 1.0, 0.0),
                              axis=0, keepdims=True)

    @pl.when(n == n_last)
    def _finalize():
        # Diagonal terms directly in log space from the (d, TP) slabs:
        #   log sim_k[p] = <f_i[:,p], f_k[:,p]> / tau   (fi already has 1/tau).
        fi32 = fi.astype(jnp.float32)
        a_log = jnp.sum(fi32 * fiid_ref[...].astype(jnp.float32),
                        axis=0, keepdims=True)            # (1, TP)
        b_log = jnp.sum(fi32 * fjjd_ref[...].astype(jnp.float32),
                        axis=0, keepdims=True)            # (1, TP)
        cnt_ii = cntii_acc[...]
        coeff = cnt_ii / (cnt_ii + cntjj_acc[...] + eps)
        # Each zero-padded reference column contributed exp(0)=1 to the
        # unmasked sim1 sum; remove that constant before the log.
        log_den = jnp.log(den_acc[...] - pad_cols + eps)
        vals = coeff * (a_log + b_log - 2.0 * log_den)    # (1, TP)
        out_ref[...] = vals[None]                         # (1, 1, TP)


def cross_image_contrastive_loss(features_i, features_ii, features_jj,
                                 i, ii, jj, tau, epsilon=1e-4):
    d, H, W = features_i.shape
    N = H * W

    TP = 128                                   # query-pixel tile (lanes)
    n_padded = pl.cdiv(N, TP) * TP             # pad pixel axis to 128-multiple
    pad = n_padded - N
    TN = next(c for c in (512, 256, 128) if n_padded % c == 0)

    def prep_feat(f):
        f = jnp.reshape(f, (d, N)).astype(jnp.bfloat16)   # no wrapper .T
        if pad:
            f = jnp.pad(f, ((0, 0), (0, pad)))            # zero columns
        return f

    fi = prep_feat(features_i)        # (d, Np)
    fii = prep_feat(features_ii)      # (d, Np)
    fjj = prep_feat(features_jj)      # (d, Np)

    qlab = jnp.reshape(i, (1, N)).astype(jnp.int32)
    iilab = jnp.reshape(ii, (N, 1)).astype(jnp.int32)
    jjlab = jnp.reshape(jj, (N, 1)).astype(jnp.int32)
    if pad:
        # Sentinels never match real (non-negative) labels nor each other.
        qlab = jnp.pad(qlab, ((0, 0), (0, pad)), constant_values=-1)
        iilab = jnp.pad(iilab, ((0, pad), (0, 0)), constant_values=-2)
        jjlab = jnp.pad(jjlab, ((0, pad), (0, 0)), constant_values=-2)

    grid = (n_padded // TP, n_padded // TN)
    kernel = functools.partial(_contrastive_kernel,
                               inv_tau=1.0 / float(tau),
                               eps=float(epsilon),
                               pad_cols=float(pad))

    values = pl.pallas_call(
        kernel,
        out_shape=jax.ShapeDtypeStruct((grid[0], 1, TP), jnp.float32),
        grid_spec=pltpu.PrefetchScalarGridSpec(
            num_scalar_prefetch=0,
            grid=grid,
            in_specs=[
                pl.BlockSpec((d, TP), lambda p, n: (0, p)),   # f_i query slab
                pl.BlockSpec((d, TN), lambda p, n: (0, n)),   # f_ii ref tile
                pl.BlockSpec((d, TN), lambda p, n: (0, n)),   # f_jj ref tile
                pl.BlockSpec((d, TP), lambda p, n: (0, p)),   # f_ii diag cols
                pl.BlockSpec((d, TP), lambda p, n: (0, p)),   # f_jj diag cols
                pl.BlockSpec((1, TP), lambda p, n: (0, p)),   # i labels
                pl.BlockSpec((TN, 1), lambda p, n: (n, 0)),   # ii labels
                pl.BlockSpec((TN, 1), lambda p, n: (n, 0)),   # jj labels
            ],
            out_specs=pl.BlockSpec((1, 1, TP), lambda p, n: (p, 0, 0)),
            scratch_shapes=[pltpu.VMEM((1, TP), jnp.float32)] * 3,
        ),
        compiler_params=pltpu.CompilerParams(
            dimension_semantics=("parallel", "arbitrary"),
            vmem_limit_bytes=32 * 1024 * 1024),
    )(fi, fii, fjj, fii, fjj, qlab, iilab, jjlab)

    # Padded query rows have cnt_ii == 0 and therefore contribute exactly 0.
    return (-1.0 / N) * jnp.sum(values)


def _reference_loss(features_i, features_ii, features_jj, i, ii, jj,
                    tau, epsilon=1e-4):
    """Pure-JAX f32 reference mirroring the PyTorch forward."""
    d, H, W = features_i.shape
    N = H * W
    fi = features_i.reshape(d, N).astype(jnp.float32)
    fii = features_ii.reshape(d, N).astype(jnp.float32)
    fjj = features_jj.reshape(d, N).astype(jnp.float32)
    i_f = i.reshape(N).astype(jnp.int32)
    ii_f = ii.reshape(N).astype(jnp.int32)
    jj_f = jj.reshape(N).astype(jnp.int32)

    sim1 = jnp.exp(fi.T @ fii / tau)
    sim2 = jnp.exp(fi.T @ fjj / tau)
    lab = i_f[:, None]
    ii_mask = (ii_f[None, :] == lab).astype(jnp.float32)
    jj_mask = (jj_f[None, :] == lab).astype(jnp.float32)
    s1 = sim1.sum(axis=1)
    sd = (jj_mask * sim2).sum(axis=1)
    cnt_ii = ii_mask.sum(axis=1)
    cnt_jj = jj_mask.sum(axis=1)
    denom_lab = cnt_ii + cnt_jj + epsilon
    log_denom = s1 + sd + epsilon
    diag1 = jnp.diagonal(sim1)
    diag2 = jnp.diagonal(sim2)
    vals = cnt_ii / denom_lab * (jnp.log(diag1 / log_denom)
                                 + jnp.log(diag2 / log_denom))
    return (-1.0 / N) * jnp.sum(vals)


if __name__ == "__main__":
    key = jax.random.PRNGKey(0)
    k1, k2, k3, k4, k5, k6 = jax.random.split(key, 6)

    d, H, W = 32, 16, 16           # N = 256 query / reference pixels
    num_labels = 3
    tau = 0.5

    # Small-magnitude features keep exp(dot/tau) well within f32 range.
    features_i = 0.1 * jax.random.normal(k1, (d, H, W), dtype=jnp.float32)
    features_ii = 0.1 * jax.random.normal(k2, (d, H, W), dtype=jnp.float32)
    features_jj = 0.1 * jax.random.normal(k3, (d, H, W), dtype=jnp.float32)
    i_map = jax.random.randint(k4, (H, W), 0, num_labels, dtype=jnp.int32)
    ii_map = jax.random.randint(k5, (H, W), 0, num_labels, dtype=jnp.int32)
    jj_map = jax.random.randint(k6, (H, W), 0, num_labels, dtype=jnp.int32)

    loss = cross_image_contrastive_loss(features_i, features_ii, features_jj,
                                        i_map, ii_map, jj_map, tau)
    loss = jax.block_until_ready(loss)

    ref = _reference_loss(features_i, features_ii, features_jj,
                          i_map, ii_map, jj_map, tau)
    ref = jax.block_until_ready(ref)

    # Kernel uses bf16 MXU operands; compare against the f32 reference with a
    # bf16-appropriate tolerance.
    assert jnp.allclose(loss, ref, rtol=2e-2, atol=1e-3), (loss, ref)
    print("KERNEL_OK")
</pallas_src>

<mosaic_0001>
module attributes {stable_mosaic.version = 11 : i64} {
  func.func @_contrastive_kernel(%arg0: i32, %arg1: i32, %arg2: memref<32x128xbf16, #tpu.memory_space<vmem>>, %arg3: memref<32x256xbf16, #tpu.memory_space<vmem>>, %arg4: memref<32x256xbf16, #tpu.memory_space<vmem>>, %arg5: memref<32x128xbf16, #tpu.memory_space<vmem>>, %arg6: memref<32x128xbf16, #tpu.memory_space<vmem>>, %arg7: memref<1x128xi32, #tpu.memory_space<vmem>>, %arg8: memref<256x1xi32, #tpu.memory_space<vmem>>, %arg9: memref<256x1xi32, #tpu.memory_space<vmem>>, %arg10: memref<1x1x128xf32, #tpu.memory_space<vmem>>, %arg11: memref<1x128xf32, #tpu.memory_space<vmem>>, %arg12: memref<1x128xf32, #tpu.memory_space<vmem>>, %arg13: memref<1x128xf32, #tpu.memory_space<vmem>>) attributes {dimension_semantics = [#tpu.dimension_semantics<parallel>, #tpu.dimension_semantics<arbitrary>], iteration_bounds = array<i64: 2, 1>, scalar_prefetch = 0 : i64, scratch_operands = 3 : i64, tpu.core_type = #tpu.core_type<tc>, window_params = [{transform_indices = @transform_0, window_bounds = array<i64: 32, 128>}, {transform_indices = @transform_1, window_bounds = array<i64: 32, 256>}, {transform_indices = @transform_2, window_bounds = array<i64: 32, 256>}, {transform_indices = @transform_3, window_bounds = array<i64: 32, 128>}, {transform_indices = @transform_4, window_bounds = array<i64: 32, 128>}, {transform_indices = @transform_5, window_bounds = array<i64: 1, 128>}, {transform_indices = @transform_6, window_bounds = array<i64: 256, 1>}, {transform_indices = @transform_7, window_bounds = array<i64: 256, 1>}, {transform_indices = @transform_8, window_bounds = array<i64: 1, 1, 128>}]} {
    %c0_i32 = arith.constant 0 : i32
    %0 = arith.cmpi eq, %arg1, %c0_i32 : i32
    %1 = arith.extui %0 : i1 to i32
    %c0_i32_0 = arith.constant 0 : i32
    %2 = arith.cmpi ne, %1, %c0_i32_0 : i32
    scf.if %2 {
      %cst_36 = arith.constant 0.000000e+00 : f32
      %50 = vector.broadcast %cst_36 : f32 to vector<1x128xf32>
      %c0_37 = arith.constant 0 : index
      %c0_38 = arith.constant 0 : index
      %51 = vector.load %arg11[%c0_37, %c0_38] : memref<1x128xf32, #tpu.memory_space<vmem>>, vector<1x128xf32>
      tpu.vector_store %arg11[%c0_37, %c0_38], %50 {strides = array<i32>} : memref<1x128xf32, #tpu.memory_space<vmem>>, vector<1x128xf32>,
      %cst_39 = arith.constant 0.000000e+00 : f32
      %52 = vector.broadcast %cst_39 : f32 to vector<1x128xf32>
      %c0_40 = arith.constant 0 : index
      %c0_41 = arith.constant 0 : index
      %53 = vector.load %arg12[%c0_40, %c0_41] : memref<1x128xf32, #tpu.memory_space<vmem>>, vector<1x128xf32>
      tpu.vector_store %arg12[%c0_40, %c0_41], %52 {strides = array<i32>} : memref<1x128xf32, #tpu.memory_space<vmem>>, vector<1x128xf32>,
      %cst_42 = arith.constant 0.000000e+00 : f32
      %54 = vector.broadcast %cst_42 : f32 to vector<1x128xf32>
      %c0_43 = arith.constant 0 : index
      %c0_44 = arith.constant 0 : index
      %55 = vector.load %arg13[%c0_43, %c0_44] : memref<1x128xf32, #tpu.memory_space<vmem>>, vector<1x128xf32>
      tpu.vector_store %arg13[%c0_43, %c0_44], %54 {strides = array<i32>} : memref<1x128xf32, #tpu.memory_space<vmem>>, vector<1x128xf32>,
    } else {
    }
    %c0 = arith.constant 0 : index
    %c0_1 = arith.constant 0 : index
    %3 = vector.load %arg2[%c0, %c0_1] : memref<32x128xbf16, #tpu.memory_space<vmem>>, vector<32x128xbf16>
    %4 = arith.extf %3 : vector<32x128xbf16> to vector<32x128xf32>
    %cst = arith.constant 2.000000e+00 : f32
    %5 = vector.broadcast %cst : f32 to vector<32x128xf32>
    %6 = arith.mulf %4, %5 : vector<32x128xf32>
    %7 = arith.truncf %6 : vector<32x128xf32> to vector<32x128xbf16>
    %c0_2 = arith.constant 0 : index
    %c0_3 = arith.constant 0 : index
    %8 = vector.load %arg3[%c0_2, %c0_3] : memref<32x256xbf16, #tpu.memory_space<vmem>>, vector<32x256xbf16>
    %cst_4 = arith.constant dense<0.000000e+00> : vector<256x128xf32>
    %9 = tpu.matmul %8, %7, %cst_4 {dimension_numbers = #tpu.dot_dimension_numbers<[0], [0], [1], [1], [0, 1, 1, 1], [], []>} : vector<32x256xbf16>, vector<32x128xbf16>, vector<256x128xf32> -> vector<256x128xf32>
    %10 = math.exp %9 : vector<256x128xf32>
    %c0_5 = arith.constant 0 : index
    %c0_6 = arith.constant 0 : index
    %11 = vector.load %arg4[%c0_5, %c0_6] : memref<32x256xbf16, #tpu.memory_space<vmem>>, vector<32x256xbf16>
    %cst_7 = arith.constant dense<0.000000e+00> : vector<256x128xf32>
    %12 = tpu.matmul %11, %7, %cst_7 {dimension_numbers = #tpu.dot_dimension_numbers<[0], [0], [1], [1], [0, 1, 1, 1], [], []>} : vector<32x256xbf16>, vector<32x128xbf16>, vector<256x128xf32> -> vector<256x128xf32>
    %13 = math.exp %12 : vector<256x128xf32>
    %c0_8 = arith.constant 0 : index
    %c0_9 = arith.constant 0 : index
    %14 = vector.load %arg7[%c0_8, %c0_9] : memref<1x128xi32, #tpu.memory_space<vmem>>, vector<1x128xi32>
    %c0_10 = arith.constant 0 : index
    %c0_11 = arith.constant 0 : index
    %15 = vector.load %arg8[%c0_10, %c0_11] : memref<256x1xi32, #tpu.memory_space<vmem>>, vector<256x1xi32>
    %16 = vector.broadcast %15 : vector<256x1xi32> to vector<256x128xi32>
    %17 = vector.broadcast %14 : vector<1x128xi32> to vector<256x128xi32>
    %18 = arith.cmpi eq, %16, %17 : vector<256x128xi32>
    %c0_12 = arith.constant 0 : index
    %c0_13 = arith.constant 0 : index
    %19 = vector.load %arg9[%c0_12, %c0_13] : memref<256x1xi32, #tpu.memory_space<vmem>>, vector<256x1xi32>
    %20 = vector.broadcast %19 : vector<256x1xi32> to vector<256x128xi32>
    %21 = vector.broadcast %14 : vector<1x128xi32> to vector<256x128xi32>
    %22 = arith.cmpi eq, %20, %21 : vector<256x128xi32>
    %c0_14 = arith.constant 0 : index
    %c0_15 = arith.constant 0 : index
    %23 = vector.load %arg11[%c0_14, %c0_15] : memref<1x128xf32, #tpu.memory_space<vmem>>, vector<1x128xf32>
    %cst_16 = arith.constant 0.000000e+00 : f32
    %24 = vector.broadcast %cst_16 : f32 to vector<256x128xf32>
    %25 = arith.select %22, %13, %24 : vector<256x128xi1>, vector<256x128xf32>
    %26 = arith.addf %10, %25 : vector<256x128xf32>
    %cst_17 = arith.constant dense<0.000000e+00> : vector<128xf32>
    %27 = vector.multi_reduction <add>, %26, %cst_17 [0] : vector<256x128xf32> to vector<128xf32>
    %28 = vector.shape_cast %27 : vector<128xf32> to vector<1x128xf32>
    %29 = arith.addf %23, %28 : vector<1x128xf32>
    %c0_18 = arith.constant 0 : index
    %c0_19 = arith.constant 0 : index
    %30 = vector.load %arg11[%c0_18, %c0_19] : memref<1x128xf32, #tpu.memory_space<vmem>>, vector<1x128xf32>
    tpu.vector_store %arg11[%c0_18, %c0_19], %29 {strides = array<i32>} : memref<1x128xf32, #tpu.memory_space<vmem>>, vector<1x128xf32>,
    %c0_20 = arith.constant 0 : index
    %c0_21 = arith.constant 0 : index
    %31 = vector.load %arg12[%c0_20, %c0_21] : memref<1x128xf32, #tpu.memory_space<vmem>>, vector<1x128xf32>
    %cst_22 = arith.constant 1.000000e+00 : f32
    %cst_23 = arith.constant 0.000000e+00 : f32
    %32 = vector.broadcast %cst_22 : f32 to vector<256x128xf32>
    %33 = vector.broadcast %cst_23 : f32 to vector<256x128xf32>
    %34 = arith.select %18, %32, %33 : vector<256x128xi1>, vector<256x128xf32>
    %cst_24 = arith.constant dense<0.000000e+00> : vector<128xf32>
    %35 = vector.multi_reduction <add>, %34, %cst_24 [0] : vector<256x128xf32> to vector<128xf32>
    %36 = vector.shape_cast %35 : vector<128xf32> to vector<1x128xf32>
    %37 = arith.addf %31, %36 : vector<1x128xf32>
    %c0_25 = arith.constant 0 : index
    %c0_26 = arith.constant 0 : index
    %38 = vector.load %arg12[%c0_25, %c0_26] : memref<1x128xf32, #tpu.memory_space<vmem>>, vector<1x128xf32>
    tpu.vector_store %arg12[%c0_25, %c0_26], %37 {strides = array<i32>} : memref<1x128xf32, #tpu.memory_space<vmem>>, vector<1x128xf32>,
    %c0_27 = arith.constant 0 : index
    %c0_28 = arith.constant 0 : index
    %39 = vector.load %arg13[%c0_27, %c0_28] : memref<1x128xf32, #tpu.memory_space<vmem>>, vector<1x128xf32>
    %cst_29 = arith.constant 1.000000e+00 : f32
    %cst_30 = arith.constant 0.000000e+00 : f32
    %40 = vector.broadcast %cst_29 : f32 to vector<256x128xf32>
    %41 = vector.broadcast %cst_30 : f32 to vector<256x128xf32>
    %42 = arith.select %22, %40, %41 : vector<256x128xi1>, vector<256x128xf32>
    %cst_31 = arith.constant dense<0.000000e+00> : vector<128xf32>
    %43 = vector.multi_reduction <add>, %42, %cst_31 [0] : vector<256x128xf32> to vector<128xf32>
    %44 = vector.shape_cast %43 : vector<128xf32> to vector<1x128xf32>
    %45 = arith.addf %39, %44 : vector<1x128xf32>
    %c0_32 = arith.constant 0 : index
    %c0_33 = arith.constant 0 : index
    %46 = vector.load %arg13[%c0_32, %c0_33] : memref<1x128xf32, #tpu.memory_space<vmem>>, vector<1x128xf32>
    tpu.vector_store %arg13[%c0_32, %c0_33], %45 {strides = array<i32>} : memref<1x128xf32, #tpu.memory_space<vmem>>, vector<1x128xf32>,
    %c0_i32_34 = arith.constant 0 : i32
    %47 = arith.cmpi eq, %arg1, %c0_i32_34 : i32
    %48 = arith.extui %47 : i1 to i32
    %c0_i32_35 = arith.constant 0 : i32
    %49 = arith.cmpi ne, %48, %c0_i32_35 : i32
    scf.if %49 {
      %50 = arith.extf %7 : vector<32x128xbf16> to vector<32x128xf32>
      %c0_36 = arith.constant 0 : index
      %c0_37 = arith.constant 0 : index
      %51 = vector.load %arg5[%c0_36, %c0_37] : memref<32x128xbf16, #tpu.memory_space<vmem>>, vector<32x128xbf16>
      %52 = arith.extf %51 : vector<32x128xbf16> to vector<32x128xf32>
      %53 = arith.mulf %50, %52 : vector<32x128xf32>
      %cst_38 = arith.constant dense<0.000000e+00> : vector<128xf32>
      %54 = vector.multi_reduction <add>, %53, %cst_38 [0] : vector<32x128xf32> to vector<128xf32>
      %55 = vector.shape_cast %54 : vector<128xf32> to vector<1x128xf32>
      %c0_39 = arith.constant 0 : index
      %c0_40 = arith.constant 0 : index
      %56 = vector.load %arg6[%c0_39, %c0_40] : memref<32x128xbf16, #tpu.memory_space<vmem>>, vector<32x128xbf16>
      %57 = arith.extf %56 : vector<32x128xbf16> to vector<32x128xf32>
      %58 = arith.mulf %50, %57 : vector<32x128xf32>
      %cst_41 = arith.constant dense<0.000000e+00> : vector<128xf32>
      %59 = vector.multi_reduction <add>, %58, %cst_41 [0] : vector<32x128xf32> to vector<128xf32>
      %60 = vector.shape_cast %59 : vector<128xf32> to vector<1x128xf32>
      %c0_42 = arith.constant 0 : index
      %c0_43 = arith.constant 0 : index
      %61 = vector.load %arg12[%c0_42, %c0_43] : memref<1x128xf32, #tpu.memory_space<vmem>>, vector<1x128xf32>
      %c0_44 = arith.constant 0 : index
      %c0_45 = arith.constant 0 : index
      %62 = vector.load %arg13[%c0_44, %c0_45] : memref<1x128xf32, #tpu.memory_space<vmem>>, vector<1x128xf32>
      %63 = arith.addf %61, %62 : vector<1x128xf32>
      %cst_46 = arith.constant 9.99999974E-5 : f32
      %64 = vector.broadcast %cst_46 : f32 to vector<1x128xf32>
      %65 = arith.addf %63, %64 : vector<1x128xf32>
      %66 = arith.divf %61, %65 : vector<1x128xf32>
      %c0_47 = arith.constant 0 : index
      %c0_48 = arith.constant 0 : index
      %67 = vector.load %arg11[%c0_47, %c0_48] : memref<1x128xf32, #tpu.memory_space<vmem>>, vector<1x128xf32>
      %cst_49 = arith.constant 0.000000e+00 : f32
      %68 = vector.broadcast %cst_49 : f32 to vector<1x128xf32>
      %69 = arith.subf %67, %68 : vector<1x128xf32>
      %cst_50 = arith.constant 9.99999974E-5 : f32
      %70 = vector.broadcast %cst_50 : f32 to vector<1x128xf32>
      %71 = arith.addf %69, %70 : vector<1x128xf32>
      %72 = math.log %71 : vector<1x128xf32>
      %73 = arith.addf %55, %60 : vector<1x128xf32>
      %cst_51 = arith.constant 2.000000e+00 : f32
      %74 = vector.broadcast %cst_51 : f32 to vector<1x128xf32>
      %75 = arith.mulf %74, %72 : vector<1x128xf32>
      %76 = arith.subf %73, %75 : vector<1x128xf32>
      %77 = arith.mulf %66, %76 : vector<1x128xf32>
      %78 = vector.shape_cast %77 : vector<1x128xf32> to vector<1x1x128xf32>
      %c0_52 = arith.constant 0 : index
      %c0_53 = arith.constant 0 : index
      %c0_54 = arith.constant 0 : index
      %79 = vector.load %arg10[%c0_52, %c0_53, %c0_54] : memref<1x1x128xf32, #tpu.memory_space<vmem>>, vector<1x1x128xf32>
      tpu.vector_store %arg10[%c0_52, %c0_53, %c0_54], %78 {strides = array<i32>} : memref<1x1x128xf32, #tpu.memory_space<vmem>>, vector<1x1x128xf32>,
    } else {
    }
    return
  }
  func.func @transform_0(%arg0: i32, %arg1: i32) -> (i32, i32) {
    %c0_i32 = arith.constant 0 : i32
    %c0_i32_0 = arith.constant 0 : i32
    return %c0_i32, %arg0 : i32, i32
  }
  func.func @transform_1(%arg0: i32, %arg1: i32) -> (i32, i32) {
    %c0_i32 = arith.constant 0 : i32
    %c0_i32_0 = arith.constant 0 : i32
    return %c0_i32, %arg1 : i32, i32
  }
  func.func @transform_2(%arg0: i32, %arg1: i32) -> (i32, i32) {
    %c0_i32 = arith.constant 0 : i32
    %c0_i32_0 = arith.constant 0 : i32
    return %c0_i32, %arg1 : i32, i32
  }
  func.func @transform_3(%arg0: i32, %arg1: i32) -> (i32, i32) {
    %c0_i32 = arith.constant 0 : i32
    %c0_i32_0 = arith.constant 0 : i32
    return %c0_i32, %arg0 : i32, i32
  }
  func.func @transform_4(%arg0: i32, %arg1: i32) -> (i32, i32) {
    %c0_i32 = arith.constant 0 : i32
    %c0_i32_0 = arith.constant 0 : i32
    return %c0_i32, %arg0 : i32, i32
  }
  func.func @transform_5(%arg0: i32, %arg1: i32) -> (i32, i32) {
    %c0_i32 = arith.constant 0 : i32
    %c0_i32_0 = arith.constant 0 : i32
    return %c0_i32, %arg0 : i32, i32
  }
  func.func @transform_6(%arg0: i32, %arg1: i32) -> (i32, i32) {
    %c0_i32 = arith.constant 0 : i32
    %c0_i32_0 = arith.constant 0 : i32
    return %arg1, %c0_i32 : i32, i32
  }
  func.func @transform_7(%arg0: i32, %arg1: i32) -> (i32, i32) {
    %c0_i32 = arith.constant 0 : i32
    %c0_i32_0 = arith.constant 0 : i32
    return %arg1, %c0_i32 : i32, i32
  }
  func.func @transform_8(%arg0: i32, %arg1: i32) -> (i32, i32, i32) {
    %c0_i32 = arith.constant 0 : i32
    %c0_i32_0 = arith.constant 0 : i32
    %c0_i32_1 = arith.constant 0 : i32
    return %arg0, %c0_i32, %c0_i32_0 : i32, i32, i32
  }
}

</mosaic_0001>

<llo_original>
// kernel: tpu_custom_call.1
$region0: #{tpu_custom_call.1}
  #allocation0 [shape = 'u32[]', space=smem, size = 0x4, offset = 0x4, fixed_abs, tag = 'smem constant byte address 0x4 - core index']
  #allocation1 [shape = 'u32[72,128]{1,0:T(1,128)}', space=vmem, size = 0x9000, scoped, tag = 'internal scratch']
  #allocation2 [shape = 'f32[1,128]{1,0:T(1,128)}', space=vmem, size = 0x200, scoped, tag = 'scratch operand']
  #allocation3 [shape = 'f32[1,128]{1,0:T(1,128)}', space=vmem, size = 0x200, scoped, tag = 'scratch operand']
  #allocation4 [shape = 'f32[1,128]{1,0:T(1,128)}', space=vmem, size = 0x200, scoped, tag = 'scratch operand']
  %s0 = inlined_call_operand.vmem [shape: bf16[32,256], index: 0, kind: input, shape index: {}]
  %s1 = inlined_call_operand.vmem [shape: bf16[32,256], index: 1, kind: input, shape index: {}]
  %s2 = inlined_call_operand.vmem [shape: bf16[32,256], index: 2, kind: input, shape index: {}]
  %s3 = inlined_call_operand.vmem [shape: bf16[32,256], index: 3, kind: input, shape index: {}]
  %s4 = inlined_call_operand.vmem [shape: bf16[32,256], index: 4, kind: input, shape index: {}]
  %s5 = inlined_call_operand.vmem [shape: s32[1,256], index: 5, kind: input, shape index: {}]
  %s6 = inlined_call_operand.vmem [shape: s32[256,1], index: 6, kind: input, shape index: {}]
  %s7 = inlined_call_operand.vmem [shape: s32[256,1], index: 7, kind: input, shape index: {}]
  %s8 = inlined_call_operand.hbm [shape: f32[2,1,128], index: 8, kind: output, shape index: {}]
  %s9 = sld [smem:[#allocation0]]
  $region196: #{tpu_custom_call.1} parent=0
    _
  %s11 = ssub.s32 1, %s9
  %s12 = scalar_select 0, %s11, %s9
  $region1: #{tpu_custom_call.1} parent=0
    #allocation5 [shape = 'u8[16384]{0}', space=vmem, size = 0x4000, scoped, tag = 'input window, operand 0']
    #allocation6 [shape = 'u8[16384]{0}', space=vmem, size = 0x4000, scoped, tag = 'input window, operand 3']
    #allocation7 [shape = 'u8[16384]{0}', space=vmem, size = 0x4000, scoped, tag = 'input window, operand 4']
    #allocation8 [shape = 'u8[1024]{0}', space=vmem, size = 0x400, scoped, tag = 'output window, operand 0']
    #allocation9 [shape = 's32[2]{0}', space=sflag, size = 0x8, scoped, tag = 'scoped memory for tpu_custom_call.1']
    %13 = vsyncpa [#allocation9], 0
    %s14 = scalar_lea.sflag [#allocation9], 1
    %15 = vsyncpa %s14, 0
    loop: start=0, step=1, limit=4
    $region2: #{tpu_custom_call.1} parent=1 // loop_pre_header
      _
    $region3: #{tpu_custom_call.1} parent=1 // loop_header
      %s17 = sphi 0, %s21
      %p18 = scmp.ge.s32.totalorder %s17, 4
      %s24 = sphi 0, %s36
      %s25 = sphi 0, %s32
      %s26 = sphi 0, %s24
      %s27 = sphi 0, %s25
      %s28 = sphi 0, %s26
      %s29 = sphi 0, %s27
      %s39 = sphi 0, %s41
      %s42 = sphi 0, %s39
      %s43 = sphi 0, %s42
      %s59 = sphi 0, %s43
      %s65 = sphi 0, %s67
      %s68 = sphi 0, %s65
      %s69 = sphi 0, %s68
      %s85 = sphi 0, %s69
      %s91 = sphi 0, %s93
      %s94 = sphi 0, %s91
      %s95 = sphi 0, %s94
      %s111 = sphi 0, %s95
      %s117 = sphi 0, %s119
      %s120 = sphi 0, %s117
      %s121 = sphi 0, %s120
      %s137 = sphi 0, %s121
      %s143 = sphi 0, %s145
      %s146 = sphi 0, %s143
      %s147 = sphi 0, %s146
      %s163 = sphi 0, %s147
      %s169 = sphi 0, %s171
      %s172 = sphi 0, %s169
      %s173 = sphi 0, %s172
      %s189 = sphi 0, %s173
      %s195 = sphi 0, %s197
      %s198 = sphi 0, %s195
      %s199 = sphi 0, %s198
      %s215 = sphi 0, %s199
      %s221 = sphi 0, %s223
      %s224 = sphi 0, %s221
      %s225 = sphi 0, %s224
      %s241 = sphi 0, %s225
      %s247 = sphi 0, %s249
      %s250 = sphi 0, %s247
      %s251 = sphi 0, %s250
      %s267 = sphi 0, %s251
    $region4: #{tpu_custom_call.1} parent=1 // loop_header_branch
      %20 = sbr.rel (%p18) target = $region8
    $region5: #{tpu_custom_call.1} parent=1 // loop_body
      %s22 = ssub.s32 %s17, 1
      %s23 = ssub.s32 %s17, 2
      %s30 = sadd.s32 1, %s25
      %p31 = scmp.ge.s32.totalorder %s30, 1
      %s32 = scalar_select %p31, 0, %s30
      %s33 = sadd.s32 1, %s24
      %s34 = scalar_select %p31, %s33, %s24
      %p35 = scmp.ge.s32.totalorder %s34, 2
      %s36 = scalar_select %p35, 0, %s34
      %s37 = ssub.s32 %s24, %s36
      %p38 = scmp.eq.s32.totalorder %s37, 0
      %s40 = sadd.s32 %s39, 1
      %s41 = scalar_select %p38, %s39, %s40
      %p44 = pneg %p38
      %p45 = scmp.eq.s32.totalorder %s17, 1
      %p46 = por %p44, %p45
      %p47 = scmp.ne.s32.totalorder %s39, %s42
      %p48 = scmp.eq.s32.totalorder %s17, 0
      %p49 = por %p47, %p48
      %p50 = scmp.ne.s32.totalorder %s39, %s42
      %p51 = scmp.eq.s32.totalorder %s22, 1
      %p52 = por %p50, %p51
      %p53 = scmp.ne.s32.totalorder %s42, %s43
      %p54 = scmp.eq.s32.totalorder %s22, 0
      %p55 = por %p53, %p54
      %p56 = scmp.ne.s32.totalorder %s42, %s43
      %p57 = scmp.eq.s32.totalorder %s23, 1
      %p58 = por %p56, %p57
      %p60 = scmp.ne.s32.totalorder %s43, %s59
      %p61 = scmp.eq.s32.totalorder %s23, 0
      %p62 = por %p60, %p61
      %s63 = ssub.s32 %s25, %s32
      %p64 = scmp.eq.s32.totalorder %s63, 0
      %s66 = sadd.s32 %s65, 1
      %s67 = scalar_select %p64, %s65, %s66
      %p70 = pneg %p64
      %p71 = scmp.eq.s32.totalorder %s17, 1
      %p72 = por %p70, %p71
      %p73 = scmp.ne.s32.totalorder %s65, %s68
      %p74 = scmp.eq.s32.totalorder %s17, 0
      %p75 = por %p73, %p74
      %p76 = scmp.ne.s32.totalorder %s65, %s68
      %p77 = scmp.eq.s32.totalorder %s22, 1
      %p78 = por %p76, %p77
      %p79 = scmp.ne.s32.totalorder %s68, %s69
      %p80 = scmp.eq.s32.totalorder %s22, 0
      %p81 = por %p79, %p80
      %p82 = scmp.ne.s32.totalorder %s68, %s69
      %p83 = scmp.eq.s32.totalorder %s23, 1
      %p84 = por %p82, %p83
      %p86 = scmp.ne.s32.totalorder %s69, %s85
      %p87 = scmp.eq.s32.totalorder %s23, 0
      %p88 = por %p86, %p87
      %s89 = ssub.s32 %s25, %s32
      %p90 = scmp.eq.s32.totalorder %s89, 0
      %s92 = sadd.s32 %s91, 1
      %s93 = scalar_select %p90, %s91, %s92
      %p96 = pneg %p90
      %p97 = scmp.eq.s32.totalorder %s17, 1
      %p98 = por %p96, %p97
      %p99 = scmp.ne.s32.totalorder %s91, %s94
      %p100 = scmp.eq.s32.totalorder %s17, 0
      %p101 = por %p99, %p100
      %p102 = scmp.ne.s32.totalorder %s91, %s94
      %p103 = scmp.eq.s32.totalorder %s22, 1
      %p104 = por %p102, %p103
      %p105 = scmp.ne.s32.totalorder %s94, %s95
      %p106 = scmp.eq.s32.totalorder %s22, 0
      %p107 = por %p105, %p106
      %p108 = scmp.ne.s32.totalorder %s94, %s95
      %p109 = scmp.eq.s32.totalorder %s23, 1
      %p110 = por %p108, %p109
      %p112 = scmp.ne.s32.totalorder %s95, %s111
      %p113 = scmp.eq.s32.totalorder %s23, 0
      %p114 = por %p112, %p113
      %s115 = ssub.s32 %s24, %s36
      %p116 = scmp.eq.s32.totalorder %s115, 0
      %s118 = sadd.s32 %s117, 1
      %s119 = scalar_select %p116, %s117, %s118
      %p122 = pneg %p116
      %p123 = scmp.eq.s32.totalorder %s17, 1
      %p124 = por %p122, %p123
      %p125 = scmp.ne.s32.totalorder %s117, %s120
      %p126 = scmp.eq.s32.totalorder %s17, 0
      %p127 = por %p125, %p126
      %p128 = scmp.ne.s32.totalorder %s117, %s120
      %p129 = scmp.eq.s32.totalorder %s22, 1
      %p130 = por %p128, %p129
      %p131 = scmp.ne.s32.totalorder %s120, %s121
      %p132 = scmp.eq.s32.totalorder %s22, 0
      %p133 = por %p131, %p132
      %p134 = scmp.ne.s32.totalorder %s120, %s121
      %p135 = scmp.eq.s32.totalorder %s23, 1
      %p136 = por %p134, %p135
      %p138 = scmp.ne.s32.totalorder %s121, %s137
      %p139 = scmp.eq.s32.totalorder %s23, 0
      %p140 = por %p138, %p139
      %s141 = ssub.s32 %s24, %s36
      %p142 = scmp.eq.s32.totalorder %s141, 0
      %s144 = sadd.s32 %s143, 1
      %s145 = scalar_select %p142, %s143, %s144
      %p148 = pneg %p142
      %p149 = scmp.eq.s32.totalorder %s17, 1
      %p150 = por %p148, %p149
      %p151 = scmp.ne.s32.totalorder %s143, %s146
      %p152 = scmp.eq.s32.totalorder %s17, 0
      %p153 = por %p151, %p152
      %p154 = scmp.ne.s32.totalorder %s143, %s146
      %p155 = scmp.eq.s32.totalorder %s22, 1
      %p156 = por %p154, %p155
      %p157 = scmp.ne.s32.totalorder %s146, %s147
      %p158 = scmp.eq.s32.totalorder %s22, 0
      %p159 = por %p157, %p158
      %p160 = scmp.ne.s32.totalorder %s146, %s147
      %p161 = scmp.eq.s32.totalorder %s23, 1
      %p162 = por %p160, %p161
      %p164 = scmp.ne.s32.totalorder %s147, %s163
      %p165 = scmp.eq.s32.totalorder %s23, 0
      %p166 = por %p164, %p165
      %s167 = ssub.s32 %s24, %s36
      %p168 = scmp.eq.s32.totalorder %s167, 0
      %s170 = sadd.s32 %s169, 1
      %s171 = scalar_select %p168, %s169, %s170
      %p174 = pneg %p168
      %p175 = scmp.eq.s32.totalorder %s17, 1
      %p176 = por %p174, %p175
      %p177 = scmp.ne.s32.totalorder %s169, %s172
      %p178 = scmp.eq.s32.totalorder %s17, 0
      %p179 = por %p177, %p178
      %p180 = scmp.ne.s32.totalorder %s169, %s172
      %p181 = scmp.eq.s32.totalorder %s22, 1
      %p182 = por %p180, %p181
      %p183 = scmp.ne.s32.totalorder %s172, %s173
      %p184 = scmp.eq.s32.totalorder %s22, 0
      %p185 = por %p183, %p184
      %p186 = scmp.ne.s32.totalorder %s172, %s173
      %p187 = scmp.eq.s32.totalorder %s23, 1
      %p188 = por %p186, %p187
      %p190 = scmp.ne.s32.totalorder %s173, %s189
      %p191 = scmp.eq.s32.totalorder %s23, 0
      %p192 = por %p190, %p191
      %s193 = ssub.s32 %s25, %s32
      %p194 = scmp.eq.s32.totalorder %s193, 0
      %s196 = sadd.s32 %s195, 1
      %s197 = scalar_select %p194, %s195, %s196
      %p200 = pneg %p194
      %p201 = scmp.eq.s32.totalorder %s17, 1
      %p202 = por %p200, %p201
      %p203 = scmp.ne.s32.totalorder %s195, %s198
      %p204 = scmp.eq.s32.totalorder %s17, 0
      %p205 = por %p203, %p204
      %p206 = scmp.ne.s32.totalorder %s195, %s198
      %p207 = scmp.eq.s32.totalorder %s22, 1
      %p208 = por %p206, %p207
      %p209 = scmp.ne.s32.totalorder %s198, %s199
      %p210 = scmp.eq.s32.totalorder %s22, 0
      %p211 = por %p209, %p210
      %p212 = scmp.ne.s32.totalorder %s198, %s199
      %p213 = scmp.eq.s32.totalorder %s23, 1
      %p214 = por %p212, %p213
      %p216 = scmp.ne.s32.totalorder %s199, %s215
      %p217 = scmp.eq.s32.totalorder %s23, 0
      %p218 = por %p216, %p217
      %s219 = ssub.s32 %s25, %s32
      %p220 = scmp.eq.s32.totalorder %s219, 0
      %s222 = sadd.s32 %s221, 1
      %s223 = scalar_select %p220, %s221, %s222
      %p226 = pneg %p220
      %p227 = scmp.eq.s32.totalorder %s17, 1
      %p228 = por %p226, %p227
      %p229 = scmp.ne.s32.totalorder %s221, %s224
      %p230 = scmp.eq.s32.totalorder %s17, 0
      %p231 = por %p229, %p230
      %p232 = scmp.ne.s32.totalorder %s221, %s224
      %p233 = scmp.eq.s32.totalorder %s22, 1
      %p234 = por %p232, %p233
      %p235 = scmp.ne.s32.totalorder %s224, %s225
      %p236 = scmp.eq.s32.totalorder %s22, 0
      %p237 = por %p235, %p236
      %p238 = scmp.ne.s32.totalorder %s224, %s225
      %p239 = scmp.eq.s32.totalorder %s23, 1
      %p240 = por %p238, %p239
      %p242 = scmp.ne.s32.totalorder %s225, %s241
      %p243 = scmp.eq.s32.totalorder %s23, 0
      %p244 = por %p242, %p243
      %s245 = ssub.s32 %s24, %s36
      %p246 = scmp.eq.s32.totalorder %s245, 0
      %s248 = sadd.s32 %s247, 1
      %s249 = scalar_select %p246, %s247, %s248
      %p252 = pneg %p246
      %p253 = scmp.eq.s32.totalorder %s17, 1
      %p254 = por %p252, %p253
      %p255 = scmp.ne.s32.totalorder %s247, %s250
      %p256 = scmp.eq.s32.totalorder %s17, 0
      %p257 = por %p255, %p256
      %p258 = scmp.ne.s32.totalorder %s247, %s250
      %p259 = scmp.eq.s32.totalorder %s22, 1
      %p260 = por %p258, %p259
      %p261 = scmp.ne.s32.totalorder %s250, %s251
      %p262 = scmp.eq.s32.totalorder %s22, 0
      %p263 = por %p261, %p262
      %p264 = scmp.ne.s32.totalorder %s250, %s251
      %p265 = scmp.eq.s32.totalorder %s23, 1
      %p266 = por %p264, %p265
      %p268 = scmp.ne.s32.totalorder %s251, %s267
      %p269 = scmp.eq.s32.totalorder %s23, 0
      %p270 = por %p268, %p269
      %p271 = scmp.le.s32.totalorder 1, %s17
      %p272 = scmp.lt.s32.totalorder %s17, 3
      %p273 = pnand %p271, %p272
      %p274 = pneg %p273
      // Predicated region
      $region9: #{tpu_custom_call.1} parent=5 // pred_check
        _
      $region10: #{tpu_custom_call.1} parent=5 // pred_check_branch
        %276 = sbr.rel (%p273) target = $region12
      $region11: #{tpu_custom_call.1} parent=5 // pred_region
        %s277 = ssub.s32 %s17, 1
        // Predicated region
        $region13: #{tpu_custom_call.1} parent=11 // pred_check
          %p278 = pneg %p81
        $region14: #{tpu_custom_call.1} parent=11 // pred_check_branch
          %280 = sbr.rel (%p278) target = $region16
        $region15: #{tpu_custom_call.1} parent=11 // pred_region
          %s281 = smul.u32 2, %s27
          %p282 = scmp.lt.s32.totalorder %s281, 1
          %s283 = scalar_select %p282, %s281, 1
          %s284 = smul.addr %s283, 4
          %s285 = scalar_lea.vmem %s1, %s284
          %s286 = smul.u32 2, %s27
        $region16: #{tpu_custom_call.1} parent=11 // pred_fallthru
          _
        // Predicated region
        $region17: #{tpu_custom_call.1} parent=11 // pred_check
          %p287 = pneg %p107
        $region18: #{tpu_custom_call.1} parent=11 // pred_check_branch
          %289 = sbr.rel (%p287) target = $region20
        $region19: #{tpu_custom_call.1} parent=11 // pred_region
          %s290 = smul.u32 2, %s27
          %p291 = scmp.lt.s32.totalorder %s290, 1
          %s292 = scalar_select %p291, %s290, 1
          %s293 = smul.addr %s292, 4
          %s294 = scalar_lea.vmem %s2, %s293
          %s295 = smul.u32 2, %s27
        $region20: #{tpu_custom_call.1} parent=11 // pred_fallthru
          _
        // Predicated region
        $region21: #{tpu_custom_call.1} parent=11 // pred_check
          %p296 = pneg %p211
        $region22: #{tpu_custom_call.1} parent=11 // pred_check_branch
          %298 = sbr.rel (%p296) target = $region24
        $region23: #{tpu_custom_call.1} parent=11 // pred_region
          %s299 = smul.u32 32, %s27
          %p300 = scmp.lt.s32.totalorder %s299, 31
          %s301 = scalar_select %p300, %s299, 31
          %s302 = smul.addr %s301, 8
          %s303 = scalar_lea.vmem %s6, %s302
          %s304 = smul.u32 32, %s27
        $region24: #{tpu_custom_call.1} parent=11 // pred_fallthru
          _
        // Predicated region
        $region25: #{tpu_custom_call.1} parent=11 // pred_check
          %p305 = pneg %p237
        $region26: #{tpu_custom_call.1} parent=11 // pred_check_branch
          %307 = sbr.rel (%p305) target = $region28
        $region27: #{tpu_custom_call.1} parent=11 // pred_region
          %s308 = smul.u32 32, %s27
          %p309 = scmp.lt.s32.totalorder %s308, 31
          %s310 = scalar_select %p309, %s308, 31
          %s311 = smul.addr %s310, 8
          %s312 = scalar_lea.vmem %s7, %s311
          %s313 = smul.u32 32, %s27
        $region28: #{tpu_custom_call.1} parent=11 // pred_fallthru
          _
      $region12: #{tpu_custom_call.1} parent=5 // pred_fallthru
        _
      %p314 = scmp.lt.s32.totalorder %s17, 2
      // Predicated region
      $region29: #{tpu_custom_call.1} parent=5 // pred_check
        %p315 = pneg %p314
      $region30: #{tpu_custom_call.1} parent=5 // pred_check_branch
        %317 = sbr.rel (%p315) target = $region32
      $region31: #{tpu_custom_call.1} parent=5 // pred_region
        // Predicated region
        $region33: #{tpu_custom_call.1} parent=31 // pred_check
          %p318 = pneg %p49
        $region34: #{tpu_custom_call.1} parent=31 // pred_check_branch
          %320 = sbr.rel (%p318) target = $region36
        $region35: #{tpu_custom_call.1} parent=31 // pred_region
          %s321 = sand.u32 %s39, 1
          %s322 = sand.u32 %s39, 1
          %s323 = smul.addr %s322, 16
          %s324 = scalar_lea.vmem [#allocation5], %s323
          %s325 = smul.addr %s24, 4
          %s326 = scalar_lea.vmem %s0, %s325
          // Predicated region
          $region37: #{tpu_custom_call.1} parent=35 // pred_check
            _
          $region38: #{tpu_custom_call.1} parent=35 // pred_check_branch
            %328 = sbr.rel (0) target = $region40
          $region39: #{tpu_custom_call.1} parent=35 // pred_region
            // Predicated region
            $region41: #{tpu_custom_call.1} parent=39 // pred_check
              _
            $region42: #{tpu_custom_call.1} parent=39 // pred_check_branch
              %330 = sbr.rel target = $region44
            $region43: #{tpu_custom_call.1} parent=39 // pred_region
              // Predicated region
              $region56: #{tpu_custom_call.1} parent=43 // pred_check
                _
              $region57: #{tpu_custom_call.1} parent=43 // pred_check_branch
                %352 = sbr.rel (0) target = $region59
              $region58: #{tpu_custom_call.1} parent=43 // pred_region
                loop: start=0, step=1, limit=1
                $region60: #{tpu_custom_call.1} parent=58 // loop_pre_header
                  _
                $region61: #{tpu_custom_call.1} parent=58 // loop_header
                  %s354 = sphi 0, %s358
                  %p355 = scmp.ge.s32.totalorder %s354, 1
                  %s359 = sphi %s326, %s326
                  %s360 = sphi %s324, %s324
                $region62: #{tpu_custom_call.1} parent=58 // loop_header_branch
                  %357 = sbr.rel (%p355) target = $region66
                $region63: #{tpu_custom_call.1} parent=58 // loop_body
                  _
                $region64: #{tpu_custom_call.1} parent=58 // loop_footer
                  %s358 = sadd.s32 1, %s354
                $region65: #{tpu_custom_call.1} parent=58 // loop_footer_branch
                  %353 = sbr.rel target = $region61
                $region66: #{tpu_custom_call.1} parent=58 // loop_exit
                  _
                %s362 = ssub.s32 16, 1
                loop: start=0, step=1, limit=1
                $region67: #{tpu_custom_call.1} parent=58 // loop_pre_header
                  _
                $region68: #{tpu_custom_call.1} parent=58 // loop_header
                  %s364 = sphi 0, %s368
                  %p365 = scmp.ge.s32.totalorder %s364, 1
                  %s369 = sphi %s326, %s326
                  %s370 = sphi %s324, %s324
                $region69: #{tpu_custom_call.1} parent=58 // loop_header_branch
                  %367 = sbr.rel (%p365) target = $region73
                $region70: #{tpu_custom_call.1} parent=58 // loop_body
                  %v371 = vld [vmem:[%s369] sm:%s362]
                  %372 = vst [vmem:[%s370] sm:%s362] %v371
                  %v373 = vld [vmem:[%s369 + $0x8] sm:%s362]
                  %374 = vst [vmem:[%s370 + $0x4] sm:%s362] %v373
                  %v375 = vld [vmem:[%s369 + $0x10] sm:%s362]
                  %376 = vst [vmem:[%s370 + $0x8] sm:%s362] %v375
                  %v377 = vld [vmem:[%s369 + $0x18] sm:%s362]
                  %378 = vst [vmem:[%s370 + $0xc] sm:%s362] %v377
                $region71: #{tpu_custom_call.1} parent=58 // loop_footer
                  %s368 = sadd.s32 1, %s364
                $region72: #{tpu_custom_call.1} parent=58 // loop_footer_branch
                  %363 = sbr.rel target = $region68
                $region73: #{tpu_custom_call.1} parent=58 // loop_exit
                  _
              $region59: #{tpu_custom_call.1} parent=43 // pred_fallthru
                _
            $region44: #{tpu_custom_call.1} parent=39 // pred_fallthru
              _
            // Predicated region
            $region45: #{tpu_custom_call.1} parent=39 // pred_check
              _
            $region46: #{tpu_custom_call.1} parent=39 // pred_check_branch
              %332 = sbr.rel (0) target = $region48
            $region47: #{tpu_custom_call.1} parent=39 // pred_region
              %s334 = ssub.s32 16, 1
              loop: start=0, step=1, limit=1
              $region49: #{tpu_custom_call.1} parent=47 // loop_pre_header
                _
              $region50: #{tpu_custom_call.1} parent=47 // loop_header
                %s336 = sphi 0, %s340
                %p337 = scmp.ge.s32.totalorder %s336, 1
                %s341 = sphi %s326, %s326
                %s342 = sphi %s324, %s324
              $region51: #{tpu_custom_call.1} parent=47 // loop_header_branch
                %339 = sbr.rel (%p337) target = $region55
              $region52: #{tpu_custom_call.1} parent=47 // loop_body
                %v343 = vld [vmem:[%s341] sm:%s334]
                %344 = vst [vmem:[%s342] sm:%s334] %v343
                %v345 = vld [vmem:[%s341 + $0x8] sm:%s334]
                %346 = vst [vmem:[%s342 + $0x4] sm:%s334] %v345
                %v347 = vld [vmem:[%s341 + $0x10] sm:%s334]
                %348 = vst [vmem:[%s342 + $0x8] sm:%s334] %v347
                %v349 = vld [vmem:[%s341 + $0x18] sm:%s334]
                %350 = vst [vmem:[%s342 + $0xc] sm:%s334] %v349
              $region53: #{tpu_custom_call.1} parent=47 // loop_footer
                %s340 = sadd.s32 1, %s336
              $region54: #{tpu_custom_call.1} parent=47 // loop_footer_branch
                %335 = sbr.rel target = $region50
              $region55: #{tpu_custom_call.1} parent=47 // loop_exit
                _
            $region48: #{tpu_custom_call.1} parent=39 // pred_fallthru
              _
          $region40: #{tpu_custom_call.1} parent=35 // pred_fallthru
            _
          %379 = vnop
        $region36: #{tpu_custom_call.1} parent=31 // pred_fallthru
          _
        // Predicated region
        $region74: #{tpu_custom_call.1} parent=31 // pred_check
          %p380 = pneg %p127
        $region75: #{tpu_custom_call.1} parent=31 // pred_check_branch
          %382 = sbr.rel (%p380) target = $region77
        $region76: #{tpu_custom_call.1} parent=31 // pred_region
          %s383 = sand.u32 %s117, 1
          %s384 = sand.u32 %s117, 1
          %s385 = smul.addr %s384, 16
          %s386 = scalar_lea.vmem [#allocation6], %s385
          %s387 = smul.addr %s24, 4
          %s388 = scalar_lea.vmem %s3, %s387
          // Predicated region
          $region78: #{tpu_custom_call.1} parent=76 // pred_check
            _
          $region79: #{tpu_custom_call.1} parent=76 // pred_check_branch
            %390 = sbr.rel (0) target = $region81
          $region80: #{tpu_custom_call.1} parent=76 // pred_region
            // Predicated region
            $region82: #{tpu_custom_call.1} parent=80 // pred_check
              _
            $region83: #{tpu_custom_call.1} parent=80 // pred_check_branch
              %392 = sbr.rel target = $region85
            $region84: #{tpu_custom_call.1} parent=80 // pred_region
              // Predicated region
              $region97: #{tpu_custom_call.1} parent=84 // pred_check
                _
              $region98: #{tpu_custom_call.1} parent=84 // pred_check_branch
                %414 = sbr.rel (0) target = $region100
              $region99: #{tpu_custom_call.1} parent=84 // pred_region
                loop: start=0, step=1, limit=1
                $region101: #{tpu_custom_call.1} parent=99 // loop_pre_header
                  _
                $region102: #{tpu_custom_call.1} parent=99 // loop_header
                  %s416 = sphi 0, %s420
                  %p417 = scmp.ge.s32.totalorder %s416, 1
                  %s421 = sphi %s388, %s388
                  %s422 = sphi %s386, %s386
                $region103: #{tpu_custom_call.1} parent=99 // loop_header_branch
                  %419 = sbr.rel (%p417) target = $region107
                $region104: #{tpu_custom_call.1} parent=99 // loop_body
                  _
                $region105: #{tpu_custom_call.1} parent=99 // loop_footer
                  %s420 = sadd.s32 1, %s416
                $region106: #{tpu_custom_call.1} parent=99 // loop_footer_branch
                  %415 = sbr.rel target = $region102
                $region107: #{tpu_custom_call.1} parent=99 // loop_exit
                  _
                %s424 = ssub.s32 16, 1
                loop: start=0, step=1, limit=1
                $region108: #{tpu_custom_call.1} parent=99 // loop_pre_header
                  _
                $region109: #{tpu_custom_call.1} parent=99 // loop_header
                  %s426 = sphi 0, %s430
                  %p427 = scmp.ge.s32.totalorder %s426, 1
                  %s431 = sphi %s388, %s388
                  %s432 = sphi %s386, %s386
                $region110: #{tpu_custom_call.1} parent=99 // loop_header_branch
                  %429 = sbr.rel (%p427) target = $region114
                $region111: #{tpu_custom_call.1} parent=99 // loop_body
                  %v433 = vld [vmem:[%s431] sm:%s424]
                  %434 = vst [vmem:[%s432] sm:%s424] %v433
                  %v435 = vld [vmem:[%s431 + $0x8] sm:%s424]
                  %436 = vst [vmem:[%s432 + $0x4] sm:%s424] %v435
                  %v437 = vld [vmem:[%s431 + $0x10] sm:%s424]
                  %438 = vst [vmem:[%s432 + $0x8] sm:%s424] %v437
                  %v439 = vld [vmem:[%s431 + $0x18] sm:%s424]
                  %440 = vst [vmem:[%s432 + $0xc] sm:%s424] %v439
                $region112: #{tpu_custom_call.1} parent=99 // loop_footer
                  %s430 = sadd.s32 1, %s426
                $region113: #{tpu_custom_call.1} parent=99 // loop_footer_branch
                  %425 = sbr.rel target = $region109
                $region114: #{tpu_custom_call.1} parent=99 // loop_exit
                  _
              $region100: #{tpu_custom_call.1} parent=84 // pred_fallthru
                _
            $region85: #{tpu_custom_call.1} parent=80 // pred_fallthru
              _
            // Predicated region
            $region86: #{tpu_custom_call.1} parent=80 // pred_check
              _
            $region87: #{tpu_custom_call.1} parent=80 // pred_check_branch
              %394 = sbr.rel (0) target = $region89
            $region88: #{tpu_custom_call.1} parent=80 // pred_region
              %s396 = ssub.s32 16, 1
              loop: start=0, step=1, limit=1
              $region90: #{tpu_custom_call.1} parent=88 // loop_pre_header
                _
              $region91: #{tpu_custom_call.1} parent=88 // loop_header
                %s398 = sphi 0, %s402
                %p399 = scmp.ge.s32.totalorder %s398, 1
                %s403 = sphi %s388, %s388
                %s404 = sphi %s386, %s386
              $region92: #{tpu_custom_call.1} parent=88 // loop_header_branch
                %401 = sbr.rel (%p399) target = $region96
              $region93: #{tpu_custom_call.1} parent=88 // loop_body
                %v405 = vld [vmem:[%s403] sm:%s396]
                %406 = vst [vmem:[%s404] sm:%s396] %v405
                %v407 = vld [vmem:[%s403 + $0x8] sm:%s396]
                %408 = vst [vmem:[%s404 + $0x4] sm:%s396] %v407
                %v409 = vld [vmem:[%s403 + $0x10] sm:%s396]
                %410 = vst [vmem:[%s404 + $0x8] sm:%s396] %v409
                %v411 = vld [vmem:[%s403 + $0x18] sm:%s396]
                %412 = vst [vmem:[%s404 + $0xc] sm:%s396] %v411
              $region94: #{tpu_custom_call.1} parent=88 // loop_footer
                %s402 = sadd.s32 1, %s398
              $region95: #{tpu_custom_call.1} parent=88 // loop_footer_branch
                %397 = sbr.rel target = $region91
              $region96: #{tpu_custom_call.1} parent=88 // loop_exit
                _
            $region89: #{tpu_custom_call.1} parent=80 // pred_fallthru
              _
          $region81: #{tpu_custom_call.1} parent=76 // pred_fallthru
            _
          %441 = vnop
        $region77: #{tpu_custom_call.1} parent=31 // pred_fallthru
          _
        // Predicated region
        $region115: #{tpu_custom_call.1} parent=31 // pred_check
          %p442 = pneg %p153
        $region116: #{tpu_custom_call.1} parent=31 // pred_check_branch
          %444 = sbr.rel (%p442) target = $region118
        $region117: #{tpu_custom_call.1} parent=31 // pred_region
          %s445 = sand.u32 %s143, 1
          %s446 = sand.u32 %s143, 1
          %s447 = smul.addr %s446, 16
          %s448 = scalar_lea.vmem [#allocation7], %s447
          %s449 = smul.addr %s24, 4
          %s450 = scalar_lea.vmem %s4, %s449
          // Predicated region
          $region119: #{tpu_custom_call.1} parent=117 // pred_check
            _
          $region120: #{tpu_custom_call.1} parent=117 // pred_check_branch
            %452 = sbr.rel (0) target = $region122
          $region121: #{tpu_custom_call.1} parent=117 // pred_region
            // Predicated region
            $region123: #{tpu_custom_call.1} parent=121 // pred_check
              _
            $region124: #{tpu_custom_call.1} parent=121 // pred_check_branch
              %454 = sbr.rel target = $region126
            $region125: #{tpu_custom_call.1} parent=121 // pred_region
              // Predicated region
              $region138: #{tpu_custom_call.1} parent=125 // pred_check
                _
              $region139: #{tpu_custom_call.1} parent=125 // pred_check_branch
                %476 = sbr.rel (0) target = $region141
              $region140: #{tpu_custom_call.1} parent=125 // pred_region
                loop: start=0, step=1, limit=1
                $region142: #{tpu_custom_call.1} parent=140 // loop_pre_header
                  _
                $region143: #{tpu_custom_call.1} parent=140 // loop_header
                  %s478 = sphi 0, %s482
                  %p479 = scmp.ge.s32.totalorder %s478, 1
                  %s483 = sphi %s450, %s450
                  %s484 = sphi %s448, %s448
                $region144: #{tpu_custom_call.1} parent=140 // loop_header_branch
                  %481 = sbr.rel (%p479) target = $region148
                $region145: #{tpu_custom_call.1} parent=140 // loop_body
                  _
                $region146: #{tpu_custom_call.1} parent=140 // loop_footer
                  %s482 = sadd.s32 1, %s478
                $region147: #{tpu_custom_call.1} parent=140 // loop_footer_branch
                  %477 = sbr.rel target = $region143
                $region148: #{tpu_custom_call.1} parent=140 // loop_exit
                  _
                %s486 = ssub.s32 16, 1
                loop: start=0, step=1, limit=1
                $region149: #{tpu_custom_call.1} parent=140 // loop_pre_header
                  _
                $region150: #{tpu_custom_call.1} parent=140 // loop_header
                  %s488 = sphi 0, %s492
                  %p489 = scmp.ge.s32.totalorder %s488, 1
                  %s493 = sphi %s450, %s450
                  %s494 = sphi %s448, %s448
                $region151: #{tpu_custom_call.1} parent=140 // loop_header_branch
                  %491 = sbr.rel (%p489) target = $region155
                $region152: #{tpu_custom_call.1} parent=140 // loop_body
                  %v495 = vld [vmem:[%s493] sm:%s486]
                  %496 = vst [vmem:[%s494] sm:%s486] %v495
                  %v497 = vld [vmem:[%s493 + $0x8] sm:%s486]
                  %498 = vst [vmem:[%s494 + $0x4] sm:%s486] %v497
                  %v499 = vld [vmem:[%s493 + $0x10] sm:%s486]
                  %500 = vst [vmem:[%s494 + $0x8] sm:%s486] %v499
                  %v501 = vld [vmem:[%s493 + $0x18] sm:%s486]
                  %502 = vst [vmem:[%s494 + $0xc] sm:%s486] %v501
                $region153: #{tpu_custom_call.1} parent=140 // loop_footer
                  %s492 = sadd.s32 1, %s488
                $region154: #{tpu_custom_call.1} parent=140 // loop_footer_branch
                  %487 = sbr.rel target = $region150
                $region155: #{tpu_custom_call.1} parent=140 // loop_exit
                  _
              $region141: #{tpu_custom_call.1} parent=125 // pred_fallthru
                _
            $region126: #{tpu_custom_call.1} parent=121 // pred_fallthru
              _
            // Predicated region
            $region127: #{tpu_custom_call.1} parent=121 // pred_check
              _
            $region128: #{tpu_custom_call.1} parent=121 // pred_check_branch
              %456 = sbr.rel (0) target = $region130
            $region129: #{tpu_custom_call.1} parent=121 // pred_region
              %s458 = ssub.s32 16, 1
              loop: start=0, step=1, limit=1
              $region131: #{tpu_custom_call.1} parent=129 // loop_pre_header
                _
              $region132: #{tpu_custom_call.1} parent=129 // loop_header
                %s460 = sphi 0, %s464
                %p461 = scmp.ge.s32.totalorder %s460, 1
                %s465 = sphi %s450, %s450
                %s466 = sphi %s448, %s448
              $region133: #{tpu_custom_call.1} parent=129 // loop_header_branch
                %463 = sbr.rel (%p461) target = $region137
              $region134: #{tpu_custom_call.1} parent=129 // loop_body
                %v467 = vld [vmem:[%s465] sm:%s458]
                %468 = vst [vmem:[%s466] sm:%s458] %v467
                %v469 = vld [vmem:[%s465 + $0x8] sm:%s458]
                %470 = vst [vmem:[%s466 + $0x4] sm:%s458] %v469
                %v471 = vld [vmem:[%s465 + $0x10] sm:%s458]
                %472 = vst [vmem:[%s466 + $0x8] sm:%s458] %v471
                %v473 = vld [vmem:[%s465 + $0x18] sm:%s458]
                %474 = vst [vmem:[%s466 + $0xc] sm:%s458] %v473
              $region135: #{tpu_custom_call.1} parent=129 // loop_footer
                %s464 = sadd.s32 1, %s460
              $region136: #{tpu_custom_call.1} parent=129 // loop_footer_branch
                %459 = sbr.rel target = $region132
              $region137: #{tpu_custom_call.1} parent=129 // loop_exit
                _
            $region130: #{tpu_custom_call.1} parent=121 // pred_fallthru
              _
          $region122: #{tpu_custom_call.1} parent=117 // pred_fallthru
            _
          %503 = vnop
        $region118: #{tpu_custom_call.1} parent=31 // pred_fallthru
          _
        // Predicated region
        $region156: #{tpu_custom_call.1} parent=31 // pred_check
          %p504 = pneg %p179
        $region157: #{tpu_custom_call.1} parent=31 // pred_check_branch
          %506 = sbr.rel (%p504) target = $region159
        $region158: #{tpu_custom_call.1} parent=31 // pred_region
          %p507 = scmp.lt.s32.totalorder %s24, 1
          %s508 = scalar_select %p507, %s24, 1
          %s509 = scalar_lea.vmem %s5, %s508
        $region159: #{tpu_custom_call.1} parent=31 // pred_fallthru
          _
      $region32: #{tpu_custom_call.1} parent=5 // pred_fallthru
        _
      %p510 = scmp.le.s32.totalorder 1, %s17
      %p511 = scmp.lt.s32.totalorder %s17, 3
      %p512 = pnand %p510, %p511
      %p513 = pneg %p512
      // Predicated region
      $region160: #{tpu_custom_call.1} parent=5 // pred_check
        _
      $region161: #{tpu_custom_call.1} parent=5 // pred_check_branch
        %515 = sbr.rel (%p512) target = $region163
      $region162: #{tpu_custom_call.1} parent=5 // pred_region
        %s516 = ssub.s32 %s17, 1
        %s517 = sand.u32 %s42, 1
        %s518 = sand.u32 %s42, 1
        %s519 = smul.addr %s518, 16
        %s520 = scalar_lea.vmem [#allocation5], %s519
        // Predicated region
        $region164: #{tpu_custom_call.1} parent=162 // pred_check
          %p521 = pneg %p55
        $region165: #{tpu_custom_call.1} parent=162 // pred_check_branch
          %523 = sbr.rel (%p521) target = $region167
        $region166: #{tpu_custom_call.1} parent=162 // pred_region
          _
        $region167: #{tpu_custom_call.1} parent=162 // pred_fallthru
          _
        %s524 = sand.u32 %s120, 1
        %s525 = sand.u32 %s120, 1
        %s526 = smul.addr %s525, 16
        %s527 = scalar_lea.vmem [#allocation6], %s526
        // Predicated region
        $region168: #{tpu_custom_call.1} parent=162 // pred_check
          %p528 = pneg %p133
        $region169: #{tpu_custom_call.1} parent=162 // pred_check_branch
          %530 = sbr.rel (%p528) target = $region171
        $region170: #{tpu_custom_call.1} parent=162 // pred_region
          _
        $region171: #{tpu_custom_call.1} parent=162 // pred_fallthru
          _
        %s531 = sand.u32 %s146, 1
        %s532 = sand.u32 %s146, 1
        %s533 = smul.addr %s532, 16
        %s534 = scalar_lea.vmem [#allocation7], %s533
        // Predicated region
        $region172: #{tpu_custom_call.1} parent=162 // pred_check
          %p535 = pneg %p159
        $region173: #{tpu_custom_call.1} parent=162 // pred_check_branch
          %537 = sbr.rel (%p535) target = $region175
        $region174: #{tpu_custom_call.1} parent=162 // pred_region
          _
        $region175: #{tpu_custom_call.1} parent=162 // pred_fallthru
          _
        %s538 = sand.u32 %s42, 1
        %s539 = sand.u32 %s42, 1
        %s540 = smul.addr %s539, 16
        %s541 = scalar_lea.vmem [#allocation5], %s540
        %p542 = pneg %p55
        %p543 = pneg %p52
        %s544 = smul.u32 2, %s27
        %p545 = scmp.lt.s32.totalorder %s544, 1
        %s546 = scalar_select %p545, %s544, 1
        %s547 = smul.addr %s546, 4
        %s548 = scalar_lea.vmem %s1, %s547
        %p549 = pneg %p81
        %p550 = pneg %p78
        %s551 = smul.u32 2, %s27
        %p552 = scmp.lt.s32.totalorder %s551, 1
        %s553 = scalar_select %p552, %s551, 1
        %s554 = smul.addr %s553, 4
        %s555 = scalar_lea.vmem %s2, %s554
        %p556 = pneg %p107
        %p557 = pneg %p104
        %s558 = sand.u32 %s120, 1
        %s559 = sand.u32 %s120, 1
        %s560 = smul.addr %s559, 16
        %s561 = scalar_lea.vmem [#allocation6], %s560
        %p562 = pneg %p133
        %p563 = pneg %p130
        %s564 = sand.u32 %s146, 1
        %s565 = sand.u32 %s146, 1
        %s566 = smul.addr %s565, 16
        %s567 = scalar_lea.vmem [#allocation7], %s566
        %p568 = pneg %p159
        %p569 = pneg %p156
        %p570 = scmp.lt.s32.totalorder %s26, 1
        %s571 = scalar_select %p570, %s26, 1
        %s572 = scalar_lea.vmem %s5, %s571
        %p573 = pneg %p185
        %p574 = pneg %p182
        %s575 = smul.u32 32, %s27
        %p576 = scmp.lt.s32.totalorder %s575, 31
        %s577 = scalar_select %p576, %s575, 31
        %s578 = smul.addr %s577, 8
        %s579 = scalar_lea.vmem %s6, %s578
        %p580 = pneg %p211
        %p581 = pneg %p208
        %s582 = smul.u32 32, %s27
        %p583 = scmp.lt.s32.totalorder %s582, 31
        %s584 = scalar_select %p583, %s582, 31
        %s585 = smul.addr %s584, 8
        %s586 = scalar_lea.vmem %s7, %s585
        %p587 = pneg %p237
        %p588 = pneg %p234
        %p589 = pneg %p263
        %p590 = pneg %p260
        %s591 = sand.u32 %s250, 1
        %s592 = scalar_lea.sflag [#allocation9], %s591
        %s593 = sand.u32 %s250, 1
        %s594 = scalar_lea.vmem [#allocation8], %s593
        %s595 = smul.u32 2, %s27
        %p596 = scmp.lt.s32.totalorder %s595, 1
        %s597 = scalar_select %p596, %s595, 1
        %s598 = smul.addr %s597, 4
        %s599 = scalar_lea.vmem %s1, %s598
        %s600 = smul.u32 2, %s27
        %s601 = smul.u32 2, %s27
        %p602 = scmp.lt.s32.totalorder %s601, 1
        %s603 = scalar_select %p602, %s601, 1
        %s604 = smul.addr %s603, 4
        %s605 = scalar_lea.vmem %s2, %s604
        %s606 = smul.u32 2, %s27
        %p607 = scmp.lt.s32.totalorder %s26, 1
        %s608 = scalar_select %p607, %s26, 1
        %s609 = scalar_lea.vmem %s5, %s608
        %s610 = smul.u32 32, %s27
        %p611 = scmp.lt.s32.totalorder %s610, 31
        %s612 = scalar_select %p611, %s610, 31
        %s613 = smul.addr %s612, 8
        %s614 = scalar_lea.vmem %s6, %s613
        %s615 = smul.u32 32, %s27
        %s616 = smul.u32 32, %s27
        %p617 = scmp.lt.s32.totalorder %s616, 31
        %s618 = scalar_select %p617, %s616, 31
        %s619 = smul.addr %s618, 8
        %s620 = scalar_lea.vmem %s7, %s619
        %s621 = smul.u32 32, %s27
        %p623 = scmp.eq.s32.totalorder %s27, 0
        // Predicated region
        $region176: #{tpu_custom_call.1} parent=162 // pred_check
          %p624 = pneg %p623
        $region177: #{tpu_custom_call.1} parent=162 // pred_check_branch
          %626 = sbr.rel (%p624) target = $region179
        $region178: #{tpu_custom_call.1} parent=162 // pred_region
          %627 = vst [vmem:[#allocation2] sm:$0x1] 0.0
          %628 = vst [vmem:[#allocation3] sm:$0x1] 0.0
          %629 = vst [vmem:[#allocation4] sm:$0x1] 0.0
        $region179: #{tpu_custom_call.1} parent=162 // pred_fallthru
          _
        %v630 = vld [vmem:[%s520] sm:$0xf]
        %v631 = vld [vmem:[%s520 + $0x4] sm:$0xf]
        %v632 = vld [vmem:[%s520 + $0x8] sm:$0xf]
        %v633 = vld [vmem:[%s520 + $0xc] sm:$0xf]
        %v634 = vunpack.c.l.bf16 %v630
        %v635 = vunpack.c.l.bf16 %v631
        %v636 = vunpack.c.l.bf16 %v632
        %v637 = vunpack.c.l.bf16 %v633
        %v638 = vmul.f32 %v634, 2.0
        %v639 = vmul.f32 %v635, 2.0
        %v640 = vmul.f32 %v636, 2.0
        %v641 = vmul.f32 %v637, 2.0
        %v642 = vpack.c.bf16 %v638, %v638
        %v643 = vpack.c.bf16 %v639, %v639
        %v644 = vpack.c.bf16 %v640, %v640
        %v645 = vpack.c.bf16 %v641, %v641
        %v646 = vld [vmem:[%s599] sm:$0xff]
        %v647 = vld [vmem:[%s599 + $0x8] sm:$0xff]
        %v648 = vld [vmem:[%s599 + $0x10] sm:$0xff]
        %v649 = vld [vmem:[%s599 + $0x18] sm:$0xff]
        %v654 = vunpack.c.l.b16 %v646
        %v655 = vunpack.c.h.b16 %v646
        %v656 = vunpack.c.l.b16 %v647
        %v657 = vunpack.c.h.b16 %v647
        %v658 = vunpack.c.l.b16 %v648
        %v659 = vunpack.c.h.b16 %v648
        %v660 = vunpack.c.l.b16 %v649
        %v661 = vunpack.c.h.b16 %v649
        %v662 = vpack.c.b16 %v656, %v654
        %v663 = vpack.c.b16 %v657, %v655
        %v664 = vpack.c.b16 %v660, %v658
        %v665 = vpack.c.b16 %v661, %v659
        %670 = vxpose.binary.xlu0.c.b16.start [1/16] %v663, %v662, 128
        %671 = vxpose.binary.xlu0.c.b16.cont [2/16] %v665, %v664, 128
        %672 = vxpose.binary.xlu0.c.b16.cont [3/16] 0, 0, 128
        %673 = vxpose.binary.xlu0.c.b16.cont [4/16] 0, 0, 128
        %674 = vxpose.binary.xlu0.c.b16.cont [5/16] 0, 0, 128
        %675 = vxpose.binary.xlu0.c.b16.cont [6/16] 0, 0, 128
        %676 = vxpose.binary.xlu0.c.b16.cont [7/16] 0, 0, 128
        %677 = vxpose.binary.xlu0.c.b16.end [8/16] 0, 0, 128
        %v678 = vpop.trf.xlu0
        %v679 = vpop.trf.xlu0
        %v680 = vpop.trf.xlu0
        %v681 = vpop.trf.xlu0
        %v682 = vpop.trf.xlu0
        %v683 = vpop.trf.xlu0
        %v684 = vpop.trf.xlu0
        %v685 = vpop.trf.xlu0
        %v686 = vpop.trf.xlu0
        %v687 = vpop.trf.xlu0
        %v688 = vpop.trf.xlu0
        %v689 = vpop.trf.xlu0
        %v690 = vpop.trf.xlu0
        %v691 = vpop.trf.xlu0
        %v692 = vpop.trf.xlu0
        %v693 = vpop.trf.xlu0
        %v698 = vunpack.c.l.b16 %v642
        %v699 = vunpack.c.l.b16 %v643
        %v700 = vunpack.c.l.b16 %v644
        %v701 = vunpack.c.l.b16 %v645
        %v702 = vpack.c.b16 %v699, %v698
        %v703 = vpack.c.b16 %v701, %v700
        %vm706 = vcmask 261120
        %v708 = vsel %vm706, %v678, 0
        %v711 = vsel %vm706, %v680, 0
        %v714 = vsel %vm706, %v682, 0
        %v717 = vsel %vm706, %v684, 0
        %v720 = vsel %vm706, %v686, 0
        %v723 = vsel %vm706, %v688, 0
        %v726 = vsel %vm706, %v690, 0
        %v729 = vsel %vm706, %v692, 0
        %v732 = vsel %vm706, %v679, 0
        %v735 = vsel %vm706, %v681, 0
        %v738 = vsel %vm706, %v683, 0
        %v741 = vsel %vm706, %v685, 0
        %v744 = vsel %vm706, %v687, 0
        %v747 = vsel %vm706, %v689, 0
        %v750 = vsel %vm706, %v691, 0
        %v753 = vsel %vm706, %v693, 0
        %755 = vmatpush.bf16.msra.mxu0 0
        %756 = vmatpush.bf16.msra.mxu0 0
        %757 = vmatpush.bf16.msra.mxu0 0
        %758 = vmatpush.bf16.msra.mxu0 0
        %759 = vmatpush.bf16.msra.mxu0 0
        %760 = vmatpush.bf16.msra.mxu0 0
        %761 = vmatpush.bf16.msra.mxu0 %v703
        %762 = vmatpush.bf16.msra.mxu0 %v702
        %763 = vmatmul.bf16.gmra.mxu0 %v708
        %v764 = vpop.f32.mrf.mxu0
        %v765 = vadd.f32 0.0, %v764
        %v766 = vpop.f32.mrf.mxu0
        %v767 = vadd.f32 0.0, %v766
        %768 = vmatmul.bf16.gmra.mxu0 %v711
        %v769 = vpop.f32.mrf.mxu0
        %v770 = vadd.f32 0.0, %v769
        %v771 = vpop.f32.mrf.mxu0
        %v772 = vadd.f32 0.0, %v771
        %773 = vmatmul.bf16.gmra.mxu0 %v714
        %v774 = vpop.f32.mrf.mxu0
        %v775 = vadd.f32 0.0, %v774
        %v776 = vpop.f32.mrf.mxu0
        %v777 = vadd.f32 0.0, %v776
        %778 = vmatmul.bf16.gmra.mxu0 %v717
        %v779 = vpop.f32.mrf.mxu0
        %v780 = vadd.f32 0.0, %v779
        %v781 = vpop.f32.mrf.mxu0
        %v782 = vadd.f32 0.0, %v781
        %783 = vmatmul.bf16.gmra.mxu0 %v720
        %v784 = vpop.f32.mrf.mxu0
        %v785 = vadd.f32 0.0, %v784
        %v786 = vpop.f32.mrf.mxu0
        %v787 = vadd.f32 0.0, %v786
        %788 = vmatmul.bf16.gmra.mxu0 %v723
        %v789 = vpop.f32.mrf.mxu0
        %v790 = vadd.f32 0.0, %v789
        %v791 = vpop.f32.mrf.mxu0
        %v792 = vadd.f32 0.0, %v791
        %793 = vmatmul.bf16.gmra.mxu0 %v726
        %v794 = vpop.f32.mrf.mxu0
        %v795 = vadd.f32 0.0, %v794
        %v796 = vpop.f32.mrf.mxu0
        %v797 = vadd.f32 0.0, %v796
        %798 = vmatmul.bf16.gmra.mxu0 %v729
        %v799 = vpop.f32.mrf.mxu0
        %v800 = vadd.f32 0.0, %v799
        %v801 = vpop.f32.mrf.mxu0
        %v802 = vadd.f32 0.0, %v801
        %803 = vmatmul.bf16.gmra.mxu0 %v732
        %v804 = vpop.f32.mrf.mxu0
        %v805 = vadd.f32 0.0, %v804
        %v806 = vpop.f32.mrf.mxu0
        %v807 = vadd.f32 0.0, %v806
        %808 = vmatmul.bf16.gmra.mxu0 %v735
        %v809 = vpop.f32.mrf.mxu0
        %v810 = vadd.f32 0.0, %v809
        %v811 = vpop.f32.mrf.mxu0
        %v812 = vadd.f32 0.0, %v811
        %813 = vmatmul.bf16.gmra.mxu0 %v738
        %v814 = vpop.f32.mrf.mxu0
        %v815 = vadd.f32 0.0, %v814
        %v816 = vpop.f32.mrf.mxu0
        %v817 = vadd.f32 0.0, %v816
        %818 = vmatmul.bf16.gmra.mxu0 %v741
        %v819 = vpop.f32.mrf.mxu0
        %v820 = vadd.f32 0.0, %v819
        %v821 = vpop.f32.mrf.mxu0
        %v822 = vadd.f32 0.0, %v821
        %823 = vmatmul.bf16.gmra.mxu0 %v744
        %v824 = vpop.f32.mrf.mxu0
        %v825 = vadd.f32 0.0, %v824
        %v826 = vpop.f32.mrf.mxu0
        %v827 = vadd.f32 0.0, %v826
        %828 = vmatmul.bf16.gmra.mxu0 %v747
        %v829 = vpop.f32.mrf.mxu0
        %v830 = vadd.f32 0.0, %v829
        %v831 = vpop.f32.mrf.mxu0
        %v832 = vadd.f32 0.0, %v831
        %833 = vmatmul.bf16.gmra.mxu0 %v750
        %v834 = vpop.f32.mrf.mxu0
        %v835 = vadd.f32 0.0, %v834
        %v836 = vpop.f32.mrf.mxu0
        %v837 = vadd.f32 0.0, %v836
        %838 = vmatmul.bf16.gmra.mxu0 %v753
        %v839 = vpop.f32.mrf.mxu0
        %v840 = vadd.f32 0.0, %v839
        %v841 = vpop.f32.mrf.mxu0
        %v842 = vadd.f32 0.0, %v841
        %843 = vdwg.mxu0
        %v844 = vmul.f32 %v765, 1.442695
        %v845 = vpow.pop %v844
        %v846 = vmul.f32 %v767, 1.442695
        %v847 = vpow.pop %v846
        %v848 = vmul.f32 %v770, 1.442695
        %v849 = vpow.pop %v848
        %v850 = vmul.f32 %v772, 1.442695
        %v851 = vpow.pop %v850
        %v852 = vmul.f32 %v775, 1.442695
        %v853 = vpow.pop %v852
        %v854 = vmul.f32 %v777, 1.442695
        %v855 = vpow.pop %v854
        %v856 = vmul.f32 %v780, 1.442695
        %v857 = vpow.pop %v856
        %v858 = vmul.f32 %v782, 1.442695
        %v859 = vpow.pop %v858
        %v860 = vmul.f32 %v785, 1.442695
        %v861 = vpow.pop %v860
        %v862 = vmul.f32 %v787, 1.442695
        %v863 = vpow.pop %v862
        %v864 = vmul.f32 %v790, 1.442695
        %v865 = vpow.pop %v864
        %v866 = vmul.f32 %v792, 1.442695
        %v867 = vpow.pop %v866
        %v868 = vmul.f32 %v795, 1.442695
        %v869 = vpow.pop %v868
        %v870 = vmul.f32 %v797, 1.442695
        %v871 = vpow.pop %v870
        %v872 = vmul.f32 %v800, 1.442695
        %v873 = vpow.pop %v872
        %v874 = vmul.f32 %v802, 1.442695
        %v875 = vpow.pop %v874
        %v876 = vmul.f32 %v805, 1.442695
        %v877 = vpow.pop %v876
        %v878 = vmul.f32 %v807, 1.442695
        %v879 = vpow.pop %v878
        %v880 = vmul.f32 %v810, 1.442695
        %v881 = vpow.pop %v880
        %v882 = vmul.f32 %v812, 1.442695
        %v883 = vpow.pop %v882
        %v884 = vmul.f32 %v815, 1.442695
        %v885 = vpow.pop %v884
        %v886 = vmul.f32 %v817, 1.442695
        %v887 = vpow.pop %v886
        %v888 = vmul.f32 %v820, 1.442695
        %v889 = vpow.pop %v888
        %v890 = vmul.f32 %v822, 1.442695
        %v891 = vpow.pop %v890
        %v892 = vmul.f32 %v825, 1.442695
        %v893 = vpow.pop %v892
        %v894 = vmul.f32 %v827, 1.442695
        %v895 = vpow.pop %v894
        %v896 = vmul.f32 %v830, 1.442695
        %v897 = vpow.pop %v896
        %v898 = vmul.f32 %v832, 1.442695
        %v899 = vpow.pop %v898
        %v900 = vmul.f32 %v835, 1.442695
        %v901 = vpow.pop %v900
        %v902 = vmul.f32 %v837, 1.442695
        %v903 = vpow.pop %v902
        %v904 = vmul.f32 %v840, 1.442695
        %v905 = vpow.pop %v904
        %v906 = vmul.f32 %v842, 1.442695
        %v907 = vpow.pop %v906
        %v908 = vld [vmem:[%s605] sm:$0xff]
        %v909 = vld [vmem:[%s605 + $0x8] sm:$0xff]
        %v910 = vld [vmem:[%s605 + $0x10] sm:$0xff]
        %v911 = vld [vmem:[%s605 + $0x18] sm:$0xff]
        %v916 = vunpack.c.l.b16 %v908
        %v917 = vunpack.c.h.b16 %v908
        %v918 = vunpack.c.l.b16 %v909
        %v919 = vunpack.c.h.b16 %v909
        %v920 = vunpack.c.l.b16 %v910
        %v921 = vunpack.c.h.b16 %v910
        %v922 = vunpack.c.l.b16 %v911
        %v923 = vunpack.c.h.b16 %v911
        %v924 = vpack.c.b16 %v918, %v916
        %v925 = vpack.c.b16 %v919, %v917
        %v926 = vpack.c.b16 %v922, %v920
        %v927 = vpack.c.b16 %v923, %v921
        %932 = vxpose.binary.xlu0.c.b16.start [1/16] %v925, %v924, 128
        %933 = vxpose.binary.xlu0.c.b16.cont [2/16] %v927, %v926, 128
        %934 = vxpose.binary.xlu0.c.b16.cont [3/16] 0, 0, 128
        %935 = vxpose.binary.xlu0.c.b16.cont [4/16] 0, 0, 128
        %936 = vxpose.binary.xlu0.c.b16.cont [5/16] 0, 0, 128
        %937 = vxpose.binary.xlu0.c.b16.cont [6/16] 0, 0, 128
        %938 = vxpose.binary.xlu0.c.b16.cont [7/16] 0, 0, 128
        %939 = vxpose.binary.xlu0.c.b16.end [8/16] 0, 0, 128
        %v940 = vpop.trf.xlu0
        %v941 = vpop.trf.xlu0
        %v942 = vpop.trf.xlu0
        %v943 = vpop.trf.xlu0
        %v944 = vpop.trf.xlu0
        %v945 = vpop.trf.xlu0
        %v946 = vpop.trf.xlu0
        %v947 = vpop.trf.xlu0
        %v948 = vpop.trf.xlu0
        %v949 = vpop.trf.xlu0
        %v950 = vpop.trf.xlu0
        %v951 = vpop.trf.xlu0
        %v952 = vpop.trf.xlu0
        %v953 = vpop.trf.xlu0
        %v954 = vpop.trf.xlu0
        %v955 = vpop.trf.xlu0
        %v957 = vsel %vm706, %v940, 0
        %v960 = vsel %vm706, %v942, 0
        %v963 = vsel %vm706, %v944, 0
        %v966 = vsel %vm706, %v946, 0
        %v969 = vsel %vm706, %v948, 0
        %v972 = vsel %vm706, %v950, 0
        %v975 = vsel %vm706, %v952, 0
        %v978 = vsel %vm706, %v954, 0
        %v981 = vsel %vm706, %v941, 0
        %v984 = vsel %vm706, %v943, 0
        %v987 = vsel %vm706, %v945, 0
        %v990 = vsel %vm706, %v947, 0
        %v993 = vsel %vm706, %v949, 0
        %v996 = vsel %vm706, %v951, 0
        %v999 = vsel %vm706, %v953, 0
        %v1002 = vsel %vm706, %v955, 0
        %1004 = vmatpush.bf16.msra.mxu0 0
        %1005 = vmatpush.bf16.msra.mxu0 0
        %1006 = vmatpush.bf16.msra.mxu0 0
        %1007 = vmatpush.bf16.msra.mxu0 0
        %1008 = vmatpush.bf16.msra.mxu0 0
        %1009 = vmatpush.bf16.msra.mxu0 0
        %1010 = vmatpush.bf16.msra.mxu0 %v703
        %1011 = vmatpush.bf16.msra.mxu0 %v702
        %1012 = vmatmul.bf16.gmra.mxu0 %v957
        %v1013 = vpop.f32.mrf.mxu0
        %v1014 = vadd.f32 0.0, %v1013
        %v1015 = vpop.f32.mrf.mxu0
        %v1016 = vadd.f32 0.0, %v1015
        %1017 = vmatmul.bf16.gmra.mxu0 %v960
        %v1018 = vpop.f32.mrf.mxu0
        %v1019 = vadd.f32 0.0, %v1018
        %v1020 = vpop.f32.mrf.mxu0
        %v1021 = vadd.f32 0.0, %v1020
        %1022 = vmatmul.bf16.gmra.mxu0 %v963
        %v1023 = vpop.f32.mrf.mxu0
        %v1024 = vadd.f32 0.0, %v1023
        %v1025 = vpop.f32.mrf.mxu0
        %v1026 = vadd.f32 0.0, %v1025
        %1027 = vmatmul.bf16.gmra.mxu0 %v966
        %v1028 = vpop.f32.mrf.mxu0
        %v1029 = vadd.f32 0.0, %v1028
        %v1030 = vpop.f32.mrf.mxu0
        %v1031 = vadd.f32 0.0, %v1030
        %1032 = vmatmul.bf16.gmra.mxu0 %v969
        %v1033 = vpop.f32.mrf.mxu0
        %v1034 = vadd.f32 0.0, %v1033
        %v1035 = vpop.f32.mrf.mxu0
        %v1036 = vadd.f32 0.0, %v1035
        %1037 = vmatmul.bf16.gmra.mxu0 %v972
        %v1038 = vpop.f32.mrf.mxu0
        %v1039 = vadd.f32 0.0, %v1038
        %v1040 = vpop.f32.mrf.mxu0
        %v1041 = vadd.f32 0.0, %v1040
        %1042 = vmatmul.bf16.gmra.mxu0 %v975
        %v1043 = vpop.f32.mrf.mxu0
        %v1044 = vadd.f32 0.0, %v1043
        %v1045 = vpop.f32.mrf.mxu0
        %v1046 = vadd.f32 0.0, %v1045
        %1047 = vmatmul.bf16.gmra.mxu0 %v978
        %v1048 = vpop.f32.mrf.mxu0
        %v1049 = vadd.f32 0.0, %v1048
        %v1050 = vpop.f32.mrf.mxu0
        %v1051 = vadd.f32 0.0, %v1050
        %1052 = vmatmul.bf16.gmra.mxu0 %v981
        %v1053 = vpop.f32.mrf.mxu0
        %v1054 = vadd.f32 0.0, %v1053
        %v1055 = vpop.f32.mrf.mxu0
        %v1056 = vadd.f32 0.0, %v1055
        %1057 = vmatmul.bf16.gmra.mxu0 %v984
        %v1058 = vpop.f32.mrf.mxu0
        %v1059 = vadd.f32 0.0, %v1058
        %v1060 = vpop.f32.mrf.mxu0
        %v1061 = vadd.f32 0.0, %v1060
        %1062 = vmatmul.bf16.gmra.mxu0 %v987
        %v1063 = vpop.f32.mrf.mxu0
        %v1064 = vadd.f32 0.0, %v1063
        %v1065 = vpop.f32.mrf.mxu0
        %v1066 = vadd.f32 0.0, %v1065
        %1067 = vmatmul.bf16.gmra.mxu0 %v990
        %v1068 = vpop.f32.mrf.mxu0
        %v1069 = vadd.f32 0.0, %v1068
        %v1070 = vpop.f32.mrf.mxu0
        %v1071 = vadd.f32 0.0, %v1070
        %1072 = vmatmul.bf16.gmra.mxu0 %v993
        %v1073 = vpop.f32.mrf.mxu0
        %v1074 = vadd.f32 0.0, %v1073
        %v1075 = vpop.f32.mrf.mxu0
        %v1076 = vadd.f32 0.0, %v1075
        %1077 = vmatmul.bf16.gmra.mxu0 %v996
        %v1078 = vpop.f32.mrf.mxu0
        %v1079 = vadd.f32 0.0, %v1078
        %v1080 = vpop.f32.mrf.mxu0
        %v1081 = vadd.f32 0.0, %v1080
        %1082 = vmatmul.bf16.gmra.mxu0 %v999
        %v1083 = vpop.f32.mrf.mxu0
        %v1084 = vadd.f32 0.0, %v1083
        %v1085 = vpop.f32.mrf.mxu0
        %v1086 = vadd.f32 0.0, %v1085
        %1087 = vmatmul.bf16.gmra.mxu0 %v1002
        %v1088 = vpop.f32.mrf.mxu0
        %v1089 = vadd.f32 0.0, %v1088
        %v1090 = vpop.f32.mrf.mxu0
        %v1091 = vadd.f32 0.0, %v1090
        %1092 = vdwg.mxu0
        %v1093 = vmul.f32 %v1014, 1.442695
        %v1094 = vpow.pop %v1093
        %v1095 = vmul.f32 %v1016, 1.442695
        %v1096 = vpow.pop %v1095
        %v1097 = vmul.f32 %v1019, 1.442695
        %v1098 = vpow.pop %v1097
        %v1099 = vmul.f32 %v1021, 1.442695
        %v1100 = vpow.pop %v1099
        %v1101 = vmul.f32 %v1024, 1.442695
        %v1102 = vpow.pop %v1101
        %v1103 = vmul.f32 %v1026, 1.442695
        %v1104 = vpow.pop %v1103
        %v1105 = vmul.f32 %v1029, 1.442695
        %v1106 = vpow.pop %v1105
        %v1107 = vmul.f32 %v1031, 1.442695
        %v1108 = vpow.pop %v1107
        %v1109 = vmul.f32 %v1034, 1.442695
        %v1110 = vpow.pop %v1109
        %v1111 = vmul.f32 %v1036, 1.442695
        %v1112 = vpow.pop %v1111
        %v1113 = vmul.f32 %v1039, 1.442695
        %v1114 = vpow.pop %v1113
        %v1115 = vmul.f32 %v1041, 1.442695
        %v1116 = vpow.pop %v1115
        %v1117 = vmul.f32 %v1044, 1.442695
        %v1118 = vpow.pop %v1117
        %v1119 = vmul.f32 %v1046, 1.442695
        %v1120 = vpow.pop %v1119
        %v1121 = vmul.f32 %v1049, 1.442695
        %v1122 = vpow.pop %v1121
        %v1123 = vmul.f32 %v1051, 1.442695
        %v1124 = vpow.pop %v1123
        %v1125 = vmul.f32 %v1054, 1.442695
        %v1126 = vpow.pop %v1125
        %v1127 = vmul.f32 %v1056, 1.442695
        %v1128 = vpow.pop %v1127
        %v1129 = vmul.f32 %v1059, 1.442695
        %v1130 = vpow.pop %v1129
        %v1131 = vmul.f32 %v1061, 1.442695
        %v1132 = vpow.pop %v1131
        %v1133 = vmul.f32 %v1064, 1.442695
        %v1134 = vpow.pop %v1133
        %v1135 = vmul.f32 %v1066, 1.442695
        %v1136 = vpow.pop %v1135
        %v1137 = vmul.f32 %v1069, 1.442695
        %v1138 = vpow.pop %v1137
        %v1139 = vmul.f32 %v1071, 1.442695
        %v1140 = vpow.pop %v1139
        %v1141 = vmul.f32 %v1074, 1.442695
        %v1142 = vpow.pop %v1141
        %v1143 = vmul.f32 %v1076, 1.442695
        %v1144 = vpow.pop %v1143
        %v1145 = vmul.f32 %v1079, 1.442695
        %v1146 = vpow.pop %v1145
        %v1147 = vmul.f32 %v1081, 1.442695
        %v1148 = vpow.pop %v1147
        %v1149 = vmul.f32 %v1084, 1.442695
        %v1150 = vpow.pop %v1149
        %v1151 = vmul.f32 %v1086, 1.442695
        %v1152 = vpow.pop %v1151
        %v1153 = vmul.f32 %v1089, 1.442695
        %v1154 = vpow.pop %v1153
        %v1155 = vmul.f32 %v1091, 1.442695
        %v1156 = vpow.pop %v1155
        %v1157 = vld [vmem:[%s609] sm:$0x1]
        %v1158 = vld [vmem:[%s614] sm:$0xff]
        %v1159 = vld [vmem:[%s614 + $0x8] sm:$0xff]
        %v1160 = vld [vmem:[%s614 + $0x10] sm:$0xff]
        %v1161 = vld [vmem:[%s614 + $0x18] sm:$0xff]
        %v1162 = vld [vmem:[%s614 + $0x20] sm:$0xff]
        %v1163 = vld [vmem:[%s614 + $0x28] sm:$0xff]
        %v1164 = vld [vmem:[%s614 + $0x30] sm:$0xff]
        %v1165 = vld [vmem:[%s614 + $0x38] sm:$0xff]
        %v1166 = vld [vmem:[%s614 + $0x40] sm:$0xff]
        %v1167 = vld [vmem:[%s614 + $0x48] sm:$0xff]
        %v1168 = vld [vmem:[%s614 + $0x50] sm:$0xff]
        %v1169 = vld [vmem:[%s614 + $0x58] sm:$0xff]
        %v1170 = vld [vmem:[%s614 + $0x60] sm:$0xff]
        %v1171 = vld [vmem:[%s614 + $0x68] sm:$0xff]
        %v1172 = vld [vmem:[%s614 + $0x70] sm:$0xff]
        %v1173 = vld [vmem:[%s614 + $0x78] sm:$0xff]
        %v1174 = vld [vmem:[%s614 + $0x80] sm:$0xff]
        %v1175 = vld [vmem:[%s614 + $0x88] sm:$0xff]
        %v1176 = vld [vmem:[%s614 + $0x90] sm:$0xff]
        %v1177 = vld [vmem:[%s614 + $0x98] sm:$0xff]
        %v1178 = vld [vmem:[%s614 + $0xa0] sm:$0xff]
        %v1179 = vld [vmem:[%s614 + $0xa8] sm:$0xff]
        %v1180 = vld [vmem:[%s614 + $0xb0] sm:$0xff]
        %v1181 = vld [vmem:[%s614 + $0xb8] sm:$0xff]
        %v1182 = vld [vmem:[%s614 + $0xc0] sm:$0xff]
        %v1183 = vld [vmem:[%s614 + $0xc8] sm:$0xff]
        %v1184 = vld [vmem:[%s614 + $0xd0] sm:$0xff]
        %v1185 = vld [vmem:[%s614 + $0xd8] sm:$0xff]
        %v1186 = vld [vmem:[%s614 + $0xe0] sm:$0xff]
        %v1187 = vld [vmem:[%s614 + $0xe8] sm:$0xff]
        %v1188 = vld [vmem:[%s614 + $0xf0] sm:$0xff]
        %v1189 = vld [vmem:[%s614 + $0xf8] sm:$0xff]
        %1190 = vset.pattern.permute.xlu0 0
        %1191 = vperm.xlu0 %1190, %v1158
        %v1192 = vpop.permute.xlu0 %1191
        %1193 = vset.pattern.permute.xlu0 0
        %1194 = vperm.xlu0 %1193, %v1159
        %v1195 = vpop.permute.xlu0 %1194
        %1196 = vset.pattern.permute.xlu0 0
        %1197 = vperm.xlu0 %1196, %v1160
        %v1198 = vpop.permute.xlu0 %1197
        %1199 = vset.pattern.permute.xlu0 0
        %1200 = vperm.xlu0 %1199, %v1161
        %v1201 = vpop.permute.xlu0 %1200
        %1202 = vset.pattern.permute.xlu0 0
        %1203 = vperm.xlu0 %1202, %v1162
        %v1204 = vpop.permute.xlu0 %1203
        %1205 = vset.pattern.permute.xlu0 0
        %1206 = vperm.xlu0 %1205, %v1163
        %v1207 = vpop.permute.xlu0 %1206
        %1208 = vset.pattern.permute.xlu0 0
        %1209 = vperm.xlu0 %1208, %v1164
        %v1210 = vpop.permute.xlu0 %1209
        %1211 = vset.pattern.permute.xlu0 0
        %1212 = vperm.xlu0 %1211, %v1165
        %v1213 = vpop.permute.xlu0 %1212
        %1214 = vset.pattern.permute.xlu0 0
        %1215 = vperm.xlu0 %1214, %v1166
        %v1216 = vpop.permute.xlu0 %1215
        %1217 = vset.pattern.permute.xlu0 0
        %1218 = vperm.xlu0 %1217, %v1167
        %v1219 = vpop.permute.xlu0 %1218
        %1220 = vset.pattern.permute.xlu0 0
        %1221 = vperm.xlu0 %1220, %v1168
        %v1222 = vpop.permute.xlu0 %1221
        %1223 = vset.pattern.permute.xlu0 0
        %1224 = vperm.xlu0 %1223, %v1169
        %v1225 = vpop.permute.xlu0 %1224
        %1226 = vset.pattern.permute.xlu0 0
        %1227 = vperm.xlu0 %1226, %v1170
        %v1228 = vpop.permute.xlu0 %1227
        %1229 = vset.pattern.permute.xlu0 0
        %1230 = vperm.xlu0 %1229, %v1171
        %v1231 = vpop.permute.xlu0 %1230
        %1232 = vset.pattern.permute.xlu0 0
        %1233 = vperm.xlu0 %1232, %v1172
        %v1234 = vpop.permute.xlu0 %1233
        %1235 = vset.pattern.permute.xlu0 0
        %1236 = vperm.xlu0 %1235, %v1173
        %v1237 = vpop.permute.xlu0 %1236
        %1238 = vset.pattern.permute.xlu0 0
        %1239 = vperm.xlu0 %1238, %v1174
        %v1240 = vpop.permute.xlu0 %1239
        %1241 = vset.pattern.permute.xlu0 0
        %1242 = vperm.xlu0 %1241, %v1175
        %v1243 = vpop.permute.xlu0 %1242
        %1244 = vset.pattern.permute.xlu0 0
        %1245 = vperm.xlu0 %1244, %v1176
        %v1246 = vpop.permute.xlu0 %1245
        %1247 = vset.pattern.permute.xlu0 0
        %1248 = vperm.xlu0 %1247, %v1177
        %v1249 = vpop.permute.xlu0 %1248
        %1250 = vset.pattern.permute.xlu0 0
        %1251 = vperm.xlu0 %1250, %v1178
        %v1252 = vpop.permute.xlu0 %1251
        %1253 = vset.pattern.permute.xlu0 0
        %1254 = vperm.xlu0 %1253, %v1179
        %v1255 = vpop.permute.xlu0 %1254
        %1256 = vset.pattern.permute.xlu0 0
        %1257 = vperm.xlu0 %1256, %v1180
        %v1258 = vpop.permute.xlu0 %1257
        %1259 = vset.pattern.permute.xlu0 0
        %1260 = vperm.xlu0 %1259, %v1181
        %v1261 = vpop.permute.xlu0 %1260
        %1262 = vset.pattern.permute.xlu0 0
        %1263 = vperm.xlu0 %1262, %v1182
        %v1264 = vpop.permute.xlu0 %1263
        %1265 = vset.pattern.permute.xlu0 0
        %1266 = vperm.xlu0 %1265, %v1183
        %v1267 = vpop.permute.xlu0 %1266
        %1268 = vset.pattern.permute.xlu0 0
        %1269 = vperm.xlu0 %1268, %v1184
        %v1270 = vpop.permute.xlu0 %1269
        %1271 = vset.pattern.permute.xlu0 0
        %1272 = vperm.xlu0 %1271, %v1185
        %v1273 = vpop.permute.xlu0 %1272
        %1274 = vset.pattern.permute.xlu0 0
        %1275 = vperm.xlu0 %1274, %v1186
        %v1276 = vpop.permute.xlu0 %1275
        %1277 = vset.pattern.permute.xlu0 0
        %1278 = vperm.xlu0 %1277, %v1187
        %v1279 = vpop.permute.xlu0 %1278
        %1280 = vset.pattern.permute.xlu0 0
        %1281 = vperm.xlu0 %1280, %v1188
        %v1282 = vpop.permute.xlu0 %1281
        %1283 = vset.pattern.permute.xlu0 0
        %1284 = vperm.xlu0 %1283, %v1189
        %v1285 = vpop.permute.xlu0 %1284
        %v1286 = vperm.slane %v1157, 0
        %vm1287 = vcmp.eq.s32.totalorder %v1192, %v1286
        %vm1288 = vcmp.eq.s32.totalorder %v1195, %v1286
        %vm1289 = vcmp.eq.s32.totalorder %v1198, %v1286
        %vm1290 = vcmp.eq.s32.totalorder %v1201, %v1286
        %vm1291 = vcmp.eq.s32.totalorder %v1204, %v1286
        %vm1292 = vcmp.eq.s32.totalorder %v1207, %v1286
        %vm1293 = vcmp.eq.s32.totalorder %v1210, %v1286
        %vm1294 = vcmp.eq.s32.totalorder %v1213, %v1286
        %vm1295 = vcmp.eq.s32.totalorder %v1216, %v1286
        %vm1296 = vcmp.eq.s32.totalorder %v1219, %v1286
        %vm1297 = vcmp.eq.s32.totalorder %v1222, %v1286
        %vm1298 = vcmp.eq.s32.totalorder %v1225, %v1286
        %vm1299 = vcmp.eq.s32.totalorder %v1228, %v1286
        %vm1300 = vcmp.eq.s32.totalorder %v1231, %v1286
        %vm1301 = vcmp.eq.s32.totalorder %v1234, %v1286
        %vm1302 = vcmp.eq.s32.totalorder %v1237, %v1286
        %vm1303 = vcmp.eq.s32.totalorder %v1240, %v1286
        %vm1304 = vcmp.eq.s32.totalorder %v1243, %v1286
        %vm1305 = vcmp.eq.s32.totalorder %v1246, %v1286
        %vm1306 = vcmp.eq.s32.totalorder %v1249, %v1286
        %vm1307 = vcmp.eq.s32.totalorder %v1252, %v1286
        %vm1308 = vcmp.eq.s32.totalorder %v1255, %v1286
        %vm1309 = vcmp.eq.s32.totalorder %v1258, %v1286
        %vm1310 = vcmp.eq.s32.totalorder %v1261, %v1286
        %vm1311 = vcmp.eq.s32.totalorder %v1264, %v1286
        %vm1312 = vcmp.eq.s32.totalorder %v1267, %v1286
        %vm1313 = vcmp.eq.s32.totalorder %v1270, %v1286
        %vm1314 = vcmp.eq.s32.totalorder %v1273, %v1286
        %vm1315 = vcmp.eq.s32.totalorder %v1276, %v1286
        %vm1316 = vcmp.eq.s32.totalorder %v1279, %v1286
        %vm1317 = vcmp.eq.s32.totalorder %v1282, %v1286
        %vm1318 = vcmp.eq.s32.totalorder %v1285, %v1286
        %v1319 = vld [vmem:[%s620] sm:$0xff]
        %v1320 = vld [vmem:[%s620 + $0x8] sm:$0xff]
        %v1321 = vld [vmem:[%s620 + $0x10] sm:$0xff]
        %v1322 = vld [vmem:[%s620 + $0x18] sm:$0xff]
        %v1323 = vld [vmem:[%s620 + $0x20] sm:$0xff]
        %v1324 = vld [vmem:[%s620 + $0x28] sm:$0xff]
        %v1325 = vld [vmem:[%s620 + $0x30] sm:$0xff]
        %v1326 = vld [vmem:[%s620 + $0x38] sm:$0xff]
        %v1327 = vld [vmem:[%s620 + $0x40] sm:$0xff]
        %v1328 = vld [vmem:[%s620 + $0x48] sm:$0xff]
        %v1329 = vld [vmem:[%s620 + $0x50] sm:$0xff]
        %v1330 = vld [vmem:[%s620 + $0x58] sm:$0xff]
        %v1331 = vld [vmem:[%s620 + $0x60] sm:$0xff]
        %v1332 = vld [vmem:[%s620 + $0x68] sm:$0xff]
        %v1333 = vld [vmem:[%s620 + $0x70] sm:$0xff]
        %v1334 = vld [vmem:[%s620 + $0x78] sm:$0xff]
        %v1335 = vld [vmem:[%s620 + $0x80] sm:$0xff]
        %v1336 = vld [vmem:[%s620 + $0x88] sm:$0xff]
        %v1337 = vld [vmem:[%s620 + $0x90] sm:$0xff]
        %v1338 = vld [vmem:[%s620 + $0x98] sm:$0xff]
        %v1339 = vld [vmem:[%s620 + $0xa0] sm:$0xff]
        %v1340 = vld [vmem:[%s620 + $0xa8] sm:$0xff]
        %v1341 = vld [vmem:[%s620 + $0xb0] sm:$0xff]
        %v1342 = vld [vmem:[%s620 + $0xb8] sm:$0xff]
        %v1343 = vld [vmem:[%s620 + $0xc0] sm:$0xff]
        %v1344 = vld [vmem:[%s620 + $0xc8] sm:$0xff]
        %v1345 = vld [vmem:[%s620 + $0xd0] sm:$0xff]
        %v1346 = vld [vmem:[%s620 + $0xd8] sm:$0xff]
        %v1347 = vld [vmem:[%s620 + $0xe0] sm:$0xff]
        %v1348 = vld [vmem:[%s620 + $0xe8] sm:$0xff]
        %v1349 = vld [vmem:[%s620 + $0xf0] sm:$0xff]
        %v1350 = vld [vmem:[%s620 + $0xf8] sm:$0xff]
        %1351 = vset.pattern.permute.xlu0 0
        %1352 = vperm.xlu0 %1351, %v1319
        %v1353 = vpop.permute.xlu0 %1352
        %1354 = vset.pattern.permute.xlu0 0
        %1355 = vperm.xlu0 %1354, %v1320
        %v1356 = vpop.permute.xlu0 %1355
        %1357 = vset.pattern.permute.xlu0 0
        %1358 = vperm.xlu0 %1357, %v1321
        %v1359 = vpop.permute.xlu0 %1358
        %1360 = vset.pattern.permute.xlu0 0
        %1361 = vperm.xlu0 %1360, %v1322
        %v1362 = vpop.permute.xlu0 %1361
        %1363 = vset.pattern.permute.xlu0 0
        %1364 = vperm.xlu0 %1363, %v1323
        %v1365 = vpop.permute.xlu0 %1364
        %1366 = vset.pattern.permute.xlu0 0
        %1367 = vperm.xlu0 %1366, %v1324
        %v1368 = vpop.permute.xlu0 %1367
        %1369 = vset.pattern.permute.xlu0 0
        %1370 = vperm.xlu0 %1369, %v1325
        %v1371 = vpop.permute.xlu0 %1370
        %1372 = vset.pattern.permute.xlu0 0
        %1373 = vperm.xlu0 %1372, %v1326
        %v1374 = vpop.permute.xlu0 %1373
        %1375 = vset.pattern.permute.xlu0 0
        %1376 = vperm.xlu0 %1375, %v1327
        %v1377 = vpop.permute.xlu0 %1376
        %1378 = vset.pattern.permute.xlu0 0
        %1379 = vperm.xlu0 %1378, %v1328
        %v1380 = vpop.permute.xlu0 %1379
        %1381 = vset.pattern.permute.xlu0 0
        %1382 = vperm.xlu0 %1381, %v1329
        %v1383 = vpop.permute.xlu0 %1382
        %1384 = vset.pattern.permute.xlu0 0
        %1385 = vperm.xlu0 %1384, %v1330
        %v1386 = vpop.permute.xlu0 %1385
        %1387 = vset.pattern.permute.xlu0 0
        %1388 = vperm.xlu0 %1387, %v1331
        %v1389 = vpop.permute.xlu0 %1388
        %1390 = vset.pattern.permute.xlu0 0
        %1391 = vperm.xlu0 %1390, %v1332
        %v1392 = vpop.permute.xlu0 %1391
        %1393 = vset.pattern.permute.xlu0 0
        %1394 = vperm.xlu0 %1393, %v1333
        %v1395 = vpop.permute.xlu0 %1394
        %1396 = vset.pattern.permute.xlu0 0
        %1397 = vperm.xlu0 %1396, %v1334
        %v1398 = vpop.permute.xlu0 %1397
        %1399 = vset.pattern.permute.xlu0 0
        %1400 = vperm.xlu0 %1399, %v1335
        %v1401 = vpop.permute.xlu0 %1400
        %1402 = vset.pattern.permute.xlu0 0
        %1403 = vperm.xlu0 %1402, %v1336
        %v1404 = vpop.permute.xlu0 %1403
        %1405 = vset.pattern.permute.xlu0 0
        %1406 = vperm.xlu0 %1405, %v1337
        %v1407 = vpop.permute.xlu0 %1406
        %1408 = vset.pattern.permute.xlu0 0
        %1409 = vperm.xlu0 %1408, %v1338
        %v1410 = vpop.permute.xlu0 %1409
        %1411 = vset.pattern.permute.xlu0 0
        %1412 = vperm.xlu0 %1411, %v1339
        %v1413 = vpop.permute.xlu0 %1412
        %1414 = vset.pattern.permute.xlu0 0
        %1415 = vperm.xlu0 %1414, %v1340
        %v1416 = vpop.permute.xlu0 %1415
        %1417 = vset.pattern.permute.xlu0 0
        %1418 = vperm.xlu0 %1417, %v1341
        %v1419 = vpop.permute.xlu0 %1418
        %1420 = vset.pattern.permute.xlu0 0
        %1421 = vperm.xlu0 %1420, %v1342
        %v1422 = vpop.permute.xlu0 %1421
        %1423 = vset.pattern.permute.xlu0 0
        %1424 = vperm.xlu0 %1423, %v1343
        %v1425 = vpop.permute.xlu0 %1424
        %1426 = vset.pattern.permute.xlu0 0
        %1427 = vperm.xlu0 %1426, %v1344
        %v1428 = vpop.permute.xlu0 %1427
        %1429 = vset.pattern.permute.xlu0 0
        %1430 = vperm.xlu0 %1429, %v1345
        %v1431 = vpop.permute.xlu0 %1430
        %1432 = vset.pattern.permute.xlu0 0
        %1433 = vperm.xlu0 %1432, %v1346
        %v1434 = vpop.permute.xlu0 %1433
        %1435 = vset.pattern.permute.xlu0 0
        %1436 = vperm.xlu0 %1435, %v1347
        %v1437 = vpop.permute.xlu0 %1436
        %1438 = vset.pattern.permute.xlu0 0
        %1439 = vperm.xlu0 %1438, %v1348
        %v1440 = vpop.permute.xlu0 %1439
        %1441 = vset.pattern.permute.xlu0 0
        %1442 = vperm.xlu0 %1441, %v1349
        %v1443 = vpop.permute.xlu0 %1442
        %1444 = vset.pattern.permute.xlu0 0
        %1445 = vperm.xlu0 %1444, %v1350
        %v1446 = vpop.permute.xlu0 %1445
        %vm1447 = vcmp.eq.s32.totalorder %v1353, %v1286
        %vm1448 = vcmp.eq.s32.totalorder %v1356, %v1286
        %vm1449 = vcmp.eq.s32.totalorder %v1359, %v1286
        %vm1450 = vcmp.eq.s32.totalorder %v1362, %v1286
        %vm1451 = vcmp.eq.s32.totalorder %v1365, %v1286
        %vm1452 = vcmp.eq.s32.totalorder %v1368, %v1286
        %vm1453 = vcmp.eq.s32.totalorder %v1371, %v1286
        %vm1454 = vcmp.eq.s32.totalorder %v1374, %v1286
        %vm1455 = vcmp.eq.s32.totalorder %v1377, %v1286
        %vm1456 = vcmp.eq.s32.totalorder %v1380, %v1286
        %vm1457 = vcmp.eq.s32.totalorder %v1383, %v1286
        %vm1458 = vcmp.eq.s32.totalorder %v1386, %v1286
        %vm1459 = vcmp.eq.s32.totalorder %v1389, %v1286
        %vm1460 = vcmp.eq.s32.totalorder %v1392, %v1286
        %vm1461 = vcmp.eq.s32.totalorder %v1395, %v1286
        %vm1462 = vcmp.eq.s32.totalorder %v1398, %v1286
        %vm1463 = vcmp.eq.s32.totalorder %v1401, %v1286
        %vm1464 = vcmp.eq.s32.totalorder %v1404, %v1286
        %vm1465 = vcmp.eq.s32.totalorder %v1407, %v1286
        %vm1466 = vcmp.eq.s32.totalorder %v1410, %v1286
        %vm1467 = vcmp.eq.s32.totalorder %v1413, %v1286
        %vm1468 = vcmp.eq.s32.totalorder %v1416, %v1286
        %vm1469 = vcmp.eq.s32.totalorder %v1419, %v1286
        %vm1470 = vcmp.eq.s32.totalorder %v1422, %v1286
        %vm1471 = vcmp.eq.s32.totalorder %v1425, %v1286
        %vm1472 = vcmp.eq.s32.totalorder %v1428, %v1286
        %vm1473 = vcmp.eq.s32.totalorder %v1431, %v1286
        %vm1474 = vcmp.eq.s32.totalorder %v1434, %v1286
        %vm1475 = vcmp.eq.s32.totalorder %v1437, %v1286
        %vm1476 = vcmp.eq.s32.totalorder %v1440, %v1286
        %vm1477 = vcmp.eq.s32.totalorder %v1443, %v1286
        %vm1478 = vcmp.eq.s32.totalorder %v1446, %v1286
        %v1479 = vld [vmem:[#allocation2] sm:$0x1]
        %v1480 = vsel %vm1447, %v1094, 0.0
        %v1481 = vsel %vm1448, %v1096, 0.0
        %v1482 = vsel %vm1449, %v1098, 0.0
        %v1483 = vsel %vm1450, %v1100, 0.0
        %v1484 = vsel %vm1451, %v1102, 0.0
        %v1485 = vsel %vm1452, %v1104, 0.0
        %v1486 = vsel %vm1453, %v1106, 0.0
        %v1487 = vsel %vm1454, %v1108, 0.0
        %v1488 = vsel %vm1455, %v1110, 0.0
        %v1489 = vsel %vm1456, %v1112, 0.0
        %v1490 = vsel %vm1457, %v1114, 0.0
        %v1491 = vsel %vm1458, %v1116, 0.0
        %v1492 = vsel %vm1459, %v1118, 0.0
        %v1493 = vsel %vm1460, %v1120, 0.0
        %v1494 = vsel %vm1461, %v1122, 0.0
        %v1495 = vsel %vm1462, %v1124, 0.0
        %v1496 = vsel %vm1463, %v1126, 0.0
        %v1497 = vsel %vm1464, %v1128, 0.0
        %v1498 = vsel %vm1465, %v1130, 0.0
        %v1499 = vsel %vm1466, %v1132, 0.0
        %v1500 = vsel %vm1467, %v1134, 0.0
        %v1501 = vsel %vm1468, %v1136, 0.0
        %v1502 = vsel %vm1469, %v1138, 0.0
        %v1503 = vsel %vm1470, %v1140, 0.0
        %v1504 = vsel %vm1471, %v1142, 0.0
        %v1505 = vsel %vm1472, %v1144, 0.0
        %v1506 = vsel %vm1473, %v1146, 0.0
        %v1507 = vsel %vm1474, %v1148, 0.0
        %v1508 = vsel %vm1475, %v1150, 0.0
        %v1509 = vsel %vm1476, %v1152, 0.0
        %v1510 = vsel %vm1477, %v1154, 0.0
        %v1511 = vsel %vm1478, %v1156, 0.0
        %v1512 = vadd.f32 %v845, %v1480
        %v1513 = vadd.f32 %v847, %v1481
        %v1514 = vadd.f32 %v849, %v1482
        %v1515 = vadd.f32 %v851, %v1483
        %v1516 = vadd.f32 %v853, %v1484
        %v1517 = vadd.f32 %v855, %v1485
        %v1518 = vadd.f32 %v857, %v1486
        %v1519 = vadd.f32 %v859, %v1487
        %v1520 = vadd.f32 %v861, %v1488
        %v1521 = vadd.f32 %v863, %v1489
        %v1522 = vadd.f32 %v865, %v1490
        %v1523 = vadd.f32 %v867, %v1491
        %v1524 = vadd.f32 %v869, %v1492
        %v1525 = vadd.f32 %v871, %v1493
        %v1526 = vadd.f32 %v873, %v1494
        %v1527 = vadd.f32 %v875, %v1495
        %v1528 = vadd.f32 %v877, %v1496
        %v1529 = vadd.f32 %v879, %v1497
        %v1530 = vadd.f32 %v881, %v1498
        %v1531 = vadd.f32 %v883, %v1499
        %v1532 = vadd.f32 %v885, %v1500
        %v1533 = vadd.f32 %v887, %v1501
        %v1534 = vadd.f32 %v889, %v1502
        %v1535 = vadd.f32 %v891, %v1503
        %v1536 = vadd.f32 %v893, %v1504
        %v1537 = vadd.f32 %v895, %v1505
        %v1538 = vadd.f32 %v897, %v1506
        %v1539 = vadd.f32 %v899, %v1507
        %v1540 = vadd.f32 %v901, %v1508
        %v1541 = vadd.f32 %v903, %v1509
        %v1542 = vadd.f32 %v905, %v1510
        %v1543 = vadd.f32 %v907, %v1511
        %v1544 = vadd.f32 %v1512, %v1513
        %v1545 = vadd.f32 %v1544, %v1514
        %v1546 = vadd.f32 %v1545, %v1515
        %v1547 = vadd.f32 %v1546, %v1516
        %v1548 = vadd.f32 %v1547, %v1517
        %v1549 = vadd.f32 %v1548, %v1518
        %v1550 = vadd.f32 %v1549, %v1519
        %v1551 = vadd.f32 %v1550, %v1520
        %v1552 = vadd.f32 %v1551, %v1521
        %v1553 = vadd.f32 %v1552, %v1522
        %v1554 = vadd.f32 %v1553, %v1523
        %v1555 = vadd.f32 %v1554, %v1524
        %v1556 = vadd.f32 %v1555, %v1525
        %v1557 = vadd.f32 %v1556, %v1526
        %v1558 = vadd.f32 %v1557, %v1527
        %v1559 = vadd.f32 %v1558, %v1528
        %v1560 = vadd.f32 %v1559, %v1529
        %v1561 = vadd.f32 %v1560, %v1530
        %v1562 = vadd.f32 %v1561, %v1531
        %v1563 = vadd.f32 %v1562, %v1532
        %v1564 = vadd.f32 %v1563, %v1533
        %v1565 = vadd.f32 %v1564, %v1534
        %v1566 = vadd.f32 %v1565, %v1535
        %v1567 = vadd.f32 %v1566, %v1536
        %v1568 = vadd.f32 %v1567, %v1537
        %v1569 = vadd.f32 %v1568, %v1538
        %v1570 = vadd.f32 %v1569, %v1539
        %v1571 = vadd.f32 %v1570, %v1540
        %v1572 = vadd.f32 %v1571, %v1541
        %v1573 = vadd.f32 %v1572, %v1542
        %v1574 = vadd.f32 %v1573, %v1543
        %v1575 = vrot.slane %v1574, 4
        %v1576 = vadd.f32 %v1574, %v1575
        %v1577 = vrot.slane %v1576, 2
        %v1578 = vadd.f32 %v1576, %v1577
        %v1579 = vrot.slane %v1578, 1
        %v1580 = vadd.f32 %v1578, %v1579
        %v1581 = vadd.f32 %v1479, %v1580
        %1582 = vst [vmem:[#allocation2] sm:$0x1] %v1581
        %v1583 = vld [vmem:[#allocation3] sm:$0x1]
        %v1584 = vsel %vm1287, 1.0, 0.0
        %v1585 = vsel %vm1288, 1.0, 0.0
        %v1586 = vsel %vm1289, 1.0, 0.0
        %v1587 = vsel %vm1290, 1.0, 0.0
        %v1588 = vsel %vm1291, 1.0, 0.0
        %v1589 = vsel %vm1292, 1.0, 0.0
        %v1590 = vsel %vm1293, 1.0, 0.0
        %v1591 = vsel %vm1294, 1.0, 0.0
        %v1592 = vsel %vm1295, 1.0, 0.0
        %v1593 = vsel %vm1296, 1.0, 0.0
        %v1594 = vsel %vm1297, 1.0, 0.0
        %v1595 = vsel %vm1298, 1.0, 0.0
        %v1596 = vsel %vm1299, 1.0, 0.0
        %v1597 = vsel %vm1300, 1.0, 0.0
        %v1598 = vsel %vm1301, 1.0, 0.0
        %v1599 = vsel %vm1302, 1.0, 0.0
        %v1600 = vsel %vm1303, 1.0, 0.0
        %v1601 = vsel %vm1304, 1.0, 0.0
        %v1602 = vsel %vm1305, 1.0, 0.0
        %v1603 = vsel %vm1306, 1.0, 0.0
        %v1604 = vsel %vm1307, 1.0, 0.0
        %v1605 = vsel %vm1308, 1.0, 0.0
        %v1606 = vsel %vm1309, 1.0, 0.0
        %v1607 = vsel %vm1310, 1.0, 0.0
        %v1608 = vsel %vm1311, 1.0, 0.0
        %v1609 = vsel %vm1312, 1.0, 0.0
        %v1610 = vsel %vm1313, 1.0, 0.0
        %v1611 = vsel %vm1314, 1.0, 0.0
        %v1612 = vsel %vm1315, 1.0, 0.0
        %v1613 = vsel %vm1316, 1.0, 0.0
        %v1614 = vsel %vm1317, 1.0, 0.0
        %v1615 = vsel %vm1318, 1.0, 0.0
        %v1616 = vadd.f32 %v1584, %v1585
        %v1617 = vadd.f32 %v1616, %v1586
        %v1618 = vadd.f32 %v1617, %v1587
        %v1619 = vadd.f32 %v1618, %v1588
        %v1620 = vadd.f32 %v1619, %v1589
        %v1621 = vadd.f32 %v1620, %v1590
        %v1622 = vadd.f32 %v1621, %v1591
        %v1623 = vadd.f32 %v1622, %v1592
        %v1624 = vadd.f32 %v1623, %v1593
        %v1625 = vadd.f32 %v1624, %v1594
        %v1626 = vadd.f32 %v1625, %v1595
        %v1627 = vadd.f32 %v1626, %v1596
        %v1628 = vadd.f32 %v1627, %v1597
        %v1629 = vadd.f32 %v1628, %v1598
        %v1630 = vadd.f32 %v1629, %v1599
        %v1631 = vadd.f32 %v1630, %v1600
        %v1632 = vadd.f32 %v1631, %v1601
        %v1633 = vadd.f32 %v1632, %v1602
        %v1634 = vadd.f32 %v1633, %v1603
        %v1635 = vadd.f32 %v1634, %v1604
        %v1636 = vadd.f32 %v1635, %v1605
        %v1637 = vadd.f32 %v1636, %v1606
        %v1638 = vadd.f32 %v1637, %v1607
        %v1639 = vadd.f32 %v1638, %v1608
        %v1640 = vadd.f32 %v1639, %v1609
        %v1641 = vadd.f32 %v1640, %v1610
        %v1642 = vadd.f32 %v1641, %v1611
        %v1643 = vadd.f32 %v1642, %v1612
        %v1644 = vadd.f32 %v1643, %v1613
        %v1645 = vadd.f32 %v1644, %v1614
        %v1646 = vadd.f32 %v1645, %v1615
        %v1647 = vrot.slane %v1646, 4
        %v1648 = vadd.f32 %v1646, %v1647
        %v1649 = vrot.slane %v1648, 2
        %v1650 = vadd.f32 %v1648, %v1649
        %v1651 = vrot.slane %v1650, 1
        %v1652 = vadd.f32 %v1650, %v1651
        %v1653 = vadd.f32 %v1583, %v1652
        %1654 = vst [vmem:[#allocation3] sm:$0x1] %v1653
        %v1655 = vld [vmem:[#allocation4] sm:$0x1]
        %v1656 = vsel %vm1447, 1.0, 0.0
        %v1657 = vsel %vm1448, 1.0, 0.0
        %v1658 = vsel %vm1449, 1.0, 0.0
        %v1659 = vsel %vm1450, 1.0, 0.0
        %v1660 = vsel %vm1451, 1.0, 0.0
        %v1661 = vsel %vm1452, 1.0, 0.0
        %v1662 = vsel %vm1453, 1.0, 0.0
        %v1663 = vsel %vm1454, 1.0, 0.0
        %v1664 = vsel %vm1455, 1.0, 0.0
        %v1665 = vsel %vm1456, 1.0, 0.0
        %v1666 = vsel %vm1457, 1.0, 0.0
        %v1667 = vsel %vm1458, 1.0, 0.0
        %v1668 = vsel %vm1459, 1.0, 0.0
        %v1669 = vsel %vm1460, 1.0, 0.0
        %v1670 = vsel %vm1461, 1.0, 0.0
        %v1671 = vsel %vm1462, 1.0, 0.0
        %v1672 = vsel %vm1463, 1.0, 0.0
        %v1673 = vsel %vm1464, 1.0, 0.0
        %v1674 = vsel %vm1465, 1.0, 0.0
        %v1675 = vsel %vm1466, 1.0, 0.0
        %v1676 = vsel %vm1467, 1.0, 0.0
        %v1677 = vsel %vm1468, 1.0, 0.0
        %v1678 = vsel %vm1469, 1.0, 0.0
        %v1679 = vsel %vm1470, 1.0, 0.0
        %v1680 = vsel %vm1471, 1.0, 0.0
        %v1681 = vsel %vm1472, 1.0, 0.0
        %v1682 = vsel %vm1473, 1.0, 0.0
        %v1683 = vsel %vm1474, 1.0, 0.0
        %v1684 = vsel %vm1475, 1.0, 0.0
        %v1685 = vsel %vm1476, 1.0, 0.0
        %v1686 = vsel %vm1477, 1.0, 0.0
        %v1687 = vsel %vm1478, 1.0, 0.0
        %v1688 = vadd.f32 %v1656, %v1657
        %v1689 = vadd.f32 %v1688, %v1658
        %v1690 = vadd.f32 %v1689, %v1659
        %v1691 = vadd.f32 %v1690, %v1660
        %v1692 = vadd.f32 %v1691, %v1661
        %v1693 = vadd.f32 %v1692, %v1662
        %v1694 = vadd.f32 %v1693, %v1663
        %v1695 = vadd.f32 %v1694, %v1664
        %v1696 = vadd.f32 %v1695, %v1665
        %v1697 = vadd.f32 %v1696, %v1666
        %v1698 = vadd.f32 %v1697, %v1667
        %v1699 = vadd.f32 %v1698, %v1668
        %v1700 = vadd.f32 %v1699, %v1669
        %v1701 = vadd.f32 %v1700, %v1670
        %v1702 = vadd.f32 %v1701, %v1671
        %v1703 = vadd.f32 %v1702, %v1672
        %v1704 = vadd.f32 %v1703, %v1673
        %v1705 = vadd.f32 %v1704, %v1674
        %v1706 = vadd.f32 %v1705, %v1675
        %v1707 = vadd.f32 %v1706, %v1676
        %v1708 = vadd.f32 %v1707, %v1677
        %v1709 = vadd.f32 %v1708, %v1678
        %v1710 = vadd.f32 %v1709, %v1679
        %v1711 = vadd.f32 %v1710, %v1680
        %v1712 = vadd.f32 %v1711, %v1681
        %v1713 = vadd.f32 %v1712, %v1682
        %v1714 = vadd.f32 %v1713, %v1683
        %v1715 = vadd.f32 %v1714, %v1684
        %v1716 = vadd.f32 %v1715, %v1685
        %v1717 = vadd.f32 %v1716, %v1686
        %v1718 = vadd.f32 %v1717, %v1687
        %v1719 = vrot.slane %v1718, 4
        %v1720 = vadd.f32 %v1718, %v1719
        %v1721 = vrot.slane %v1720, 2
        %v1722 = vadd.f32 %v1720, %v1721
        %v1723 = vrot.slane %v1722, 1
        %v1724 = vadd.f32 %v1722, %v1723
        %v1725 = vadd.f32 %v1655, %v1724
        %1726 = vst [vmem:[#allocation4] sm:$0x1] %v1725
        // Predicated region
        $region180: #{tpu_custom_call.1} parent=162 // pred_check
          %p1727 = pneg %p623
        $region181: #{tpu_custom_call.1} parent=162 // pred_check_branch
          %1729 = sbr.rel (%p1727) target = $region183
        $region182: #{tpu_custom_call.1} parent=162 // pred_region
          %v1730 = vunpack.c.l.bf16 %v642
          %v1731 = vunpack.c.l.bf16 %v643
          %v1732 = vunpack.c.l.bf16 %v644
          %v1733 = vunpack.c.l.bf16 %v645
          %v1734 = vld [vmem:[%s527] sm:$0xf]
          %v1735 = vld [vmem:[%s527 + $0x4] sm:$0xf]
          %v1736 = vld [vmem:[%s527 + $0x8] sm:$0xf]
          %v1737 = vld [vmem:[%s527 + $0xc] sm:$0xf]
          %v1738 = vunpack.c.l.bf16 %v1734
          %v1739 = vunpack.c.l.bf16 %v1735
          %v1740 = vunpack.c.l.bf16 %v1736
          %v1741 = vunpack.c.l.bf16 %v1737
          %v1742 = vmul.f32 %v1730, %v1738
          %v1743 = vmul.f32 %v1731, %v1739
          %v1744 = vmul.f32 %v1732, %v1740
          %v1745 = vmul.f32 %v1733, %v1741
          %v1746 = vadd.f32 %v1742, %v1743
          %v1747 = vadd.f32 %v1746, %v1744
          %v1748 = vadd.f32 %v1747, %v1745
          %v1749 = vrot.slane %v1748, 4
          %v1750 = vadd.f32 %v1748, %v1749
          %v1751 = vrot.slane %v1750, 2
          %v1752 = vadd.f32 %v1750, %v1751
          %v1753 = vrot.slane %v1752, 1
          %v1754 = vadd.f32 %v1752, %v1753
          %v1755 = vld [vmem:[%s534] sm:$0xf]
          %v1756 = vld [vmem:[%s534 + $0x4] sm:$0xf]
          %v1757 = vld [vmem:[%s534 + $0x8] sm:$0xf]
          %v1758 = vld [vmem:[%s534 + $0xc] sm:$0xf]
          %v1759 = vunpack.c.l.bf16 %v1755
          %v1760 = vunpack.c.l.bf16 %v1756
          %v1761 = vunpack.c.l.bf16 %v1757
          %v1762 = vunpack.c.l.bf16 %v1758
          %v1763 = vmul.f32 %v1730, %v1759
          %v1764 = vmul.f32 %v1731, %v1760
          %v1765 = vmul.f32 %v1732, %v1761
          %v1766 = vmul.f32 %v1733, %v1762
          %v1767 = vadd.f32 %v1763, %v1764
          %v1768 = vadd.f32 %v1767, %v1765
          %v1769 = vadd.f32 %v1768, %v1766
          %v1770 = vrot.slane %v1769, 4
          %v1771 = vadd.f32 %v1769, %v1770
          %v1772 = vrot.slane %v1771, 2
          %v1773 = vadd.f32 %v1771, %v1772
          %v1774 = vrot.slane %v1773, 1
          %v1775 = vadd.f32 %v1773, %v1774
          %v1776 = vld [vmem:[#allocation3] sm:$0x1]
          %v1777 = vld [vmem:[#allocation4] sm:$0x1]
          %v1778 = vadd.f32 %v1776, %v1777
          %v1779 = vadd.f32 %v1778, 0.0001
          %v1780 = vrcp.pop %v1779
          %v1781 = vmul.f32 %v1779, %v1780
          %v1782 = vsub.f32 1.0, %v1781
          %v1783 = vmul.f32 %v1780, %v1782
          %v1784 = vadd.f32 %v1780, %v1783
          %vm1785 = vweird.f32 %v1779
          %vm1786 = vweird.f32 %v1780
          %vm1787 = vmor %vm1785, %vm1786
          %v1788 = vsel %vm1787, %v1780, %v1784
          %v1789 = vand.u32 2147483647, %v1779
          %vm1790 = vcmp.eq.f32.partialorder %v1789, 8.507059e+37
          %v1791 = vand.u32 %v1779, 2147483648
          %v1792 = vor.u32 1.1754944e-38, %v1791
          %v1793 = vsel %vm1790, %v1792, %v1788
          %v1794 = vmul.f32 %v1776, %v1793
          %v1795 = vld [vmem:[#allocation2] sm:$0x1]
          %v1796 = vadd.f32 %v1795, 0.0001
          %v1797 = vlog2.pop %v1796
          %v1798 = vmul.f32 %v1797, 0.6931472
          %v1799 = vadd.f32 %v1754, %v1775
          %v1800 = vmul.f32 %v1798, 2.0
          %v1801 = vsub.f32 %v1799, %v1800
          %v1802 = vmul.f32 %v1794, %v1801
          %1803 = vst [vmem:[%s594] sm:$0x1] %v1802
        $region183: #{tpu_custom_call.1} parent=162 // pred_fallthru
          _
        %s1804 = sand.u32 %s250, 1
        %s1805 = scalar_lea.sflag [#allocation9], %s1804
        %s1806 = sand.u32 %s250, 1
        %s1807 = scalar_lea.vmem [#allocation8], %s1806
        // Predicated region
        $region184: #{tpu_custom_call.1} parent=162 // pred_check
          %p1808 = pneg %p260
        $region185: #{tpu_custom_call.1} parent=162 // pred_check_branch
          %1810 = sbr.rel (%p1808) target = $region187
        $region186: #{tpu_custom_call.1} parent=162 // pred_region
          %1812 = vsyncadd %s1805, 0
          %s1813 = scalar_lea.hbm %s8, %s26
          %s1815 = sshll.u32 %s1807, 4
          %s1816 = int_to_ptr.vmem [resolvable:$true] %s1815
          %s1817 = sshll.u32 %s1813, 4
          %s1818 = int_to_ptr.hbm [resolvable:$true] %s1817
          %1820 = dma.vmem_to_hbm [thread:$0]  %s1816, 16, %s1818, %s1805
        $region187: #{tpu_custom_call.1} parent=162 // pred_fallthru
          _
      $region163: #{tpu_custom_call.1} parent=5 // pred_fallthru
        _
      %p1821 = scmp.le.s32.totalorder 2, %s17
      // Predicated region
      $region188: #{tpu_custom_call.1} parent=5 // pred_check
        %p1822 = pneg %p1821
      $region189: #{tpu_custom_call.1} parent=5 // pred_check_branch
        %1824 = sbr.rel (%p1822) target = $region191
      $region190: #{tpu_custom_call.1} parent=5 // pred_region
        %s1825 = ssub.s32 %s17, 2
        // Predicated region
        $region192: #{tpu_custom_call.1} parent=190 // pred_check
          %p1826 = pneg %p266
        $region193: #{tpu_custom_call.1} parent=190 // pred_check_branch
          %1828 = sbr.rel (%p1826) target = $region195
        $region194: #{tpu_custom_call.1} parent=190 // pred_region
          %s1829 = sand.u32 %s251, 1
          %s1830 = scalar_lea.sflag [#allocation9], %s1829
          %s1831 = sand.u32 %s251, 1
          %s1832 = scalar_lea.vmem [#allocation8], %s1831
          %1834 = dma.done %s1830, 16
        $region195: #{tpu_custom_call.1} parent=190 // pred_fallthru
          _
      $region191: #{tpu_custom_call.1} parent=5 // pred_fallthru
        _
    $region6: #{tpu_custom_call.1} parent=1 // loop_footer
      %s21 = sadd.s32 1, %s17
    $region7: #{tpu_custom_call.1} parent=1 // loop_footer_branch
      %16 = sbr.rel target = $region3
    $region8: #{tpu_custom_call.1} parent=1 // loop_exit
      _
    %1835 = vsyncpa [#allocation9], 1
    %s1836 = scalar_lea.sflag [#allocation9], 1
    %1837 = vsyncpa %s1836, 1

</llo_original>
